<compile_context>
chip_gen: v7x
topology: tpu7x:2x2x1
jax: 0.10.0
libtpu: 0.0.40
codegen_flags: <defaults>
</compile_context>

<pallas_src>
import functools

import jax
import jax.numpy as jnp
from jax.experimental import pallas as pl
from jax.experimental.pallas import tpu as pltpu


def _round_up(x, m):
    return (x + m - 1) // m * m


# Conservative chunk budget vs v7x's 64 MiB physical VMEM (v5e/v6e have 128 MiB,
# so the same chunk keeps double-buffering alive on all three generations).
_VMEM_CHUNK_BUDGET = 40 * 1024 * 1024
_VMEM_LIMIT_BYTES = 48 * 1024 * 1024


def _pick_time_chunk(T, Bp, Hp):
    """Largest time chunk whose double-buffered blocks fit the VMEM budget."""
    # per-timestep bytes: double-buffered bf16 gx input + f32 states output.
    per_t = 2 * (Bp * 4 * Hp * 2) + 2 * (Bp * Hp * 4)
    # fixed: double-buffered bf16 W_hh block.
    fixed = 2 * (Hp * 4 * Hp * 2)
    tt = max(1, (_VMEM_CHUNK_BUDGET - fixed) // per_t)
    return int(min(tt, T))


def lstm_scan_kernel(gx_ref, whh_ref, states_ref, h_sc, c_sc, *, hp, tt):
    """One (batch_tile, time_chunk) grid step of the LSTM recurrence.

    gx_ref     : (Tt, Bt, 4*Hp) bf16   precomputed x @ W_ih + (b_ih + b_hh).
    whh_ref    : (Hp, 4*Hp)     bf16   recurrent weights W_hh^T, gate-padded.
    states_ref : (Tt, Bt, Hp)   f32    hidden states h_t (padded lanes stay 0).
    h_sc, c_sc : (Bt, Hp)       f32    recurrent state, persists across chunks.
    """
    # self.state is None in the module -> zero initial (h, c), once per batch tile.
    @pl.when(pl.program_id(1) == 0)
    def _():
        h_sc[...] = jnp.zeros_like(h_sc)
        c_sc[...] = jnp.zeros_like(c_sc)

    def step(t, carry):
        # Read W_hh from VMEM inside the step (vld slots hide it); do NOT hold
        # it as a live value across the whole unrolled loop.
        gates = gx_ref[t].astype(jnp.float32) + jnp.dot(
            h_sc[...].astype(jnp.bfloat16), whh_ref[...],
            preferred_element_type=jnp.float32)

        # PyTorch gate order (i, f, g, o); each slice is a whole 128-lane block.
        # Elementwise gate math stays f32 (v5e has no bf16 VPU/EUP path).
        i = jax.nn.sigmoid(gates[:, 0 * hp:1 * hp])
        f = jax.nn.sigmoid(gates[:, 1 * hp:2 * hp])
        g = jnp.tanh(gates[:, 2 * hp:3 * hp])
        o = jax.nn.sigmoid(gates[:, 3 * hp:4 * hp])

        c_new = f * c_sc[...] + i * g
        h_new = o * jnp.tanh(c_new)
        c_sc[...] = c_new
        h_sc[...] = h_new
        states_ref[t] = h_new.astype(states_ref.dtype)
        return carry

    # Partial unroll: LLO visibility without instruction-memory blowup for big Tt.
    jax.lax.fori_loop(0, tt, step, 0, unroll=max(1, min(8, tt)))


def rnn_forward(x, params, *, hidden, residual=True, max_time_chunk=None):
    """x: (B, T, Cin) float32.  Returns (out (B,T,Cout), states (B,T,H))."""
    wih, whh, b, wout, bout = params
    B, T, Cin = x.shape
    H = hidden
    Hp = _round_up(max(H, 128), 128)   # lane-align every gate block
    Bp = _round_up(B, 8)               # sublane-align batch rows

    def pad_gate_cols(w):
        # (R, 4H) -> (R, 4Hp): gate k moved to columns [k*Hp, k*Hp + H)
        r = w.shape[0]
        w4 = w.reshape(r, 4, H)
        return jnp.pad(w4, ((0, 0), (0, 0), (0, Hp - H))).reshape(r, 4 * Hp)

    wih_p = pad_gate_cols(wih)                                    # (Cin, 4Hp)
    b_p = pad_gate_cols(b)                                        # (1, 4Hp)
    whh_p = jnp.pad(pad_gate_cols(whh),
                    ((0, Hp - H), (0, 0))).astype(jnp.bfloat16)   # (Hp, 4Hp) bf16

    # Pad batch to the sublane multiple (padded rows see gx = bias only and are
    # independent of the real rows; their outputs are discarded).
    x_p = jnp.pad(x, ((0, Bp - B), (0, 0), (0, 0))) if Bp != B else x

    # Hoisted input projection, produced time-major directly (no slab transpose),
    # stored bf16 to halve HBM<->VMEM DMA volume.
    gx_t = (jnp.einsum('btc,cg->tbg', x_p, wih_p) + b_p).astype(jnp.bfloat16)  # (T, Bp, 4Hp)

    # Time-chunk size from the VMEM budget; pad T up to a multiple of it.
    tt = _pick_time_chunk(T, Bp, Hp)
    if max_time_chunk is not None:
        tt = max(1, min(tt, max_time_chunk))
    Tp = _round_up(T, tt)
    if Tp != T:
        gx_t = jnp.pad(gx_t, ((0, Tp - T), (0, 0), (0, 0)))
    n_t = Tp // tt

    # Batch tiles: split across the two v7x TensorCores when the padded batch is
    # big enough (needs Bt % 16 == 0 for the bf16 gx block); no-op otherwise.
    n_b = 2 if (Bp % 32 == 0) else 1
    Bt = Bp // n_b

    states_p = pl.pallas_call(
        functools.partial(lstm_scan_kernel, hp=Hp, tt=tt),
        out_shape=jax.ShapeDtypeStruct((Tp, Bp, Hp), jnp.float32),
        grid_spec=pltpu.PrefetchScalarGridSpec(
            num_scalar_prefetch=0,
            grid=(n_b, n_t),
            in_specs=[
                pl.BlockSpec((tt, Bt, 4 * Hp), lambda bi, ti: (ti, bi, 0)),  # gx chunk
                pl.BlockSpec((Hp, 4 * Hp), lambda bi, ti: (0, 0)),           # W_hh^T
            ],
            out_specs=pl.BlockSpec((tt, Bt, Hp), lambda bi, ti: (ti, bi, 0)),
            scratch_shapes=[
                pltpu.VMEM((Bt, Hp), jnp.float32),  # h state (persists over chunks)
                pltpu.VMEM((Bt, Hp), jnp.float32),  # c state
            ],
        ),
        compiler_params=pltpu.CompilerParams(
            dimension_semantics=("parallel", "arbitrary"),  # batch ∥, time sequential
            vmem_limit_bytes=_VMEM_LIMIT_BYTES),
    )(gx_t, whh_p)

    # Output head off the critical path, fed time-major; only the tiny
    # (T, B, Cout) result is transposed back to batch_first.
    states_tm = states_p[:T, :B, :H]                               # (T, B, H)
    out_tm = jnp.einsum('tbh,hc->tbc', states_tm, wout) + bout     # (T, B, Cout)
    out = jnp.transpose(out_tm, (1, 0, 2))                         # (B, T, Cout)
    if residual:
        out = out + x[..., 0:1]   # x[..., 0].unsqueeze(-1) broadcast over Cout
    states = jnp.transpose(states_tm, (1, 0, 2))                   # (B, T, H)
    return out.astype(x.dtype), states.astype(x.dtype)


def ref_forward(x, params, *, hidden, residual=True):
    """Pure-JAX f32 reference (lax.scan LSTM) for correctness check."""
    wih, whh, b, wout, bout = params
    B, T, Cin = x.shape

    def step(carry, x_t):
        h, c = carry
        gates = x_t @ wih + h @ whh + b
        i, f, g, o = jnp.split(gates, 4, axis=-1)
        i = jax.nn.sigmoid(i)
        f = jax.nn.sigmoid(f)
        g = jnp.tanh(g)
        o = jax.nn.sigmoid(o)
        c = f * c + i * g
        h = o * jnp.tanh(c)
        return (h, c), h

    h0 = jnp.zeros((B, hidden), jnp.float32)
    c0 = jnp.zeros((B, hidden), jnp.float32)
    _, hs = jax.lax.scan(step, (h0, c0), jnp.transpose(x, (1, 0, 2)))
    states = jnp.transpose(hs, (1, 0, 2))
    out = states @ wout + bout
    if residual:
        out = out + x[..., 0:1]
    return out, states


def init_params(key, hidden, in_channels, out_channels):
    """Deterministic init matching PyTorch default U(-1/sqrt(H), 1/sqrt(H)) shapes.
    Stored transposed relative to torch ((in,4H) etc.) for right-multiplication."""
    k = 1.0 / jnp.sqrt(hidden)
    keys = jax.random.split(key, 6)
    wih = jax.random.uniform(keys[0], (in_channels, 4 * hidden), jnp.float32, -k, k)
    whh = jax.random.uniform(keys[1], (hidden, 4 * hidden), jnp.float32, -k, k)
    b_ih = jax.random.uniform(keys[2], (1, 4 * hidden), jnp.float32, -k, k)
    b_hh = jax.random.uniform(keys[3], (1, 4 * hidden), jnp.float32, -k, k)
    b = b_ih + b_hh
    wout = jax.random.uniform(keys[4], (hidden, out_channels), jnp.float32, -k, k)
    bout = jax.random.uniform(keys[5], (1, out_channels), jnp.float32, -k, k)
    return (wih, whh, b, wout, bout)


if __name__ == "__main__":
    B, T, Cin, H, Cout = 2, 8, 1, 32, 1

    key = jax.random.PRNGKey(0)
    kx, kp = jax.random.split(key)
    x = jax.random.normal(kx, (B, T, Cin), jnp.float32)
    params = init_params(kp, H, Cin, Cout)

    # max_time_chunk=4 exercises the multi-chunk grid path (scratch carry across
    # time chunks) even at this tiny demo size.
    out, states = rnn_forward(x, params, hidden=H, residual=True, max_time_chunk=4)
    out = jax.block_until_ready(out)
    states = jax.block_until_ready(states)

    out_ref, states_ref = ref_forward(x, params, hidden=H, residual=True)
    assert out.shape == (B, T, Cout) and states.shape == (B, T, H)
    # Tolerances loosened vs the f32 reference: the recurrent matmul operands
    # and gx are bf16 (f32 accumulation).
    assert jnp.allclose(states, states_ref, rtol=2e-2, atol=2e-2)
    assert jnp.allclose(out, out_ref, rtol=2e-2, atol=2e-2)

    print("KERNEL_OK")
</pallas_src>

<mosaic_0001>
module attributes {stable_mosaic.version = 11 : i64} {
  func.func @lstm_scan_kernel(%arg0: i32, %arg1: i32, %arg2: memref<4x8x512xbf16, #tpu.memory_space<vmem>>, %arg3: memref<128x512xbf16, #tpu.memory_space<vmem>>, %arg4: memref<4x8x128xf32, #tpu.memory_space<vmem>>, %arg5: memref<8x128xf32, #tpu.memory_space<vmem>>, %arg6: memref<8x128xf32, #tpu.memory_space<vmem>>) attributes {dimension_semantics = [#tpu.dimension_semantics<parallel>, #tpu.dimension_semantics<arbitrary>], iteration_bounds = array<i64: 1, 2>, scalar_prefetch = 0 : i64, scratch_operands = 2 : i64, tpu.core_type = #tpu.core_type<tc>, window_params = [{transform_indices = @transform_0, window_bounds = array<i64: 4, 8, 512>}, {pipeline_mode = #tpu.pipeline_mode<synchronous>, transform_indices = @transform_1, window_bounds = array<i64: 128, 512>}, {transform_indices = @transform_2, window_bounds = array<i64: 4, 8, 128>}]} {
    %c0_i32 = arith.constant 0 : i32
    %0 = arith.cmpi eq, %arg1, %c0_i32 : i32
    %1 = arith.extui %0 : i1 to i32
    %c0_i32_0 = arith.constant 0 : i32
    %2 = arith.cmpi ne, %1, %c0_i32_0 : i32
    scf.if %2 {
      %cst_72 = arith.constant 0.000000e+00 : f32
      %167 = vector.broadcast %cst_72 : f32 to vector<8x128xf32>
      %c0_73 = arith.constant 0 : index
      %c0_74 = arith.constant 0 : index
      %168 = vector.load %arg5[%c0_73, %c0_74] : memref<8x128xf32, #tpu.memory_space<vmem>>, vector<8x128xf32>
      tpu.vector_store %arg5[%c0_73, %c0_74], %167 {strides = array<i32>} : memref<8x128xf32, #tpu.memory_space<vmem>>, vector<8x128xf32>,
      %cst_75 = arith.constant 0.000000e+00 : f32
      %169 = vector.broadcast %cst_75 : f32 to vector<8x128xf32>
      %c0_76 = arith.constant 0 : index
      %c0_77 = arith.constant 0 : index
      %170 = vector.load %arg6[%c0_76, %c0_77] : memref<8x128xf32, #tpu.memory_space<vmem>>, vector<8x128xf32>
      tpu.vector_store %arg6[%c0_76, %c0_77], %169 {strides = array<i32>} : memref<8x128xf32, #tpu.memory_space<vmem>>, vector<8x128xf32>,
    } else {
    }
    %c0_i32_1 = arith.constant 0 : i32
    %3 = arith.index_cast %c0_i32_1 : i32 to index
    %c0 = arith.constant 0 : index
    %c0_2 = arith.constant 0 : index
    %4 = vector.load %arg2[%3, %c0, %c0_2] : memref<4x8x512xbf16, #tpu.memory_space<vmem>>, vector<1x8x512xbf16>
    %5 = vector.shape_cast %4 : vector<1x8x512xbf16> to vector<8x512xbf16>
    %6 = arith.extf %5 : vector<8x512xbf16> to vector<8x512xf32>
    %c0_3 = arith.constant 0 : index
    %c0_4 = arith.constant 0 : index
    %7 = vector.load %arg5[%c0_3, %c0_4] : memref<8x128xf32, #tpu.memory_space<vmem>>, vector<8x128xf32>
    %8 = arith.truncf %7 : vector<8x128xf32> to vector<8x128xbf16>
    %c0_5 = arith.constant 0 : index
    %c0_6 = arith.constant 0 : index
    %9 = vector.load %arg3[%c0_5, %c0_6] : memref<128x512xbf16, #tpu.memory_space<vmem>>, vector<128x512xbf16>
    %cst = arith.constant dense<0.000000e+00> : vector<8x512xf32>
    %10 = tpu.matmul %8, %9, %cst {dimension_numbers = #tpu.dot_dimension_numbers<[1], [0], [0], [1], [0, 0, 1, 1], [], []>} : vector<8x128xbf16>, vector<128x512xbf16>, vector<8x512xf32> -> vector<8x512xf32>
    %11 = arith.addf %6, %10 : vector<8x512xf32>
    %12 = vector.extract_strided_slice %11 {offsets = [0, 0], sizes = [8, 128], strides = [1, 1]} : vector<8x512xf32> to vector<8x128xf32>
    %13 = arith.negf %12 : vector<8x128xf32>
    %14 = math.exp %13 : vector<8x128xf32>
    %cst_7 = arith.constant 1.000000e+00 : f32
    %15 = vector.broadcast %cst_7 : f32 to vector<8x128xf32>
    %16 = arith.addf %15, %14 : vector<8x128xf32>
    %17 = arith.divf %15, %16 : vector<8x128xf32>
    %18 = vector.extract_strided_slice %11 {offsets = [0, 128], sizes = [8, 128], strides = [1, 1]} : vector<8x512xf32> to vector<8x128xf32>
    %19 = arith.negf %18 : vector<8x128xf32>
    %20 = math.exp %19 : vector<8x128xf32>
    %cst_8 = arith.constant 1.000000e+00 : f32
    %21 = vector.broadcast %cst_8 : f32 to vector<8x128xf32>
    %22 = arith.addf %21, %20 : vector<8x128xf32>
    %23 = arith.divf %21, %22 : vector<8x128xf32>
    %24 = vector.extract_strided_slice %11 {offsets = [0, 256], sizes = [8, 128], strides = [1, 1]} : vector<8x512xf32> to vector<8x128xf32>
    %25 = math.tanh %24 : vector<8x128xf32>
    %26 = vector.extract_strided_slice %11 {offsets = [0, 384], sizes = [8, 128], strides = [1, 1]} : vector<8x512xf32> to vector<8x128xf32>
    %27 = arith.negf %26 : vector<8x128xf32>
    %28 = math.exp %27 : vector<8x128xf32>
    %cst_9 = arith.constant 1.000000e+00 : f32
    %29 = vector.broadcast %cst_9 : f32 to vector<8x128xf32>
    %30 = arith.addf %29, %28 : vector<8x128xf32>
    %31 = arith.divf %29, %30 : vector<8x128xf32>
    %c0_10 = arith.constant 0 : index
    %c0_11 = arith.constant 0 : index
    %32 = vector.load %arg6[%c0_10, %c0_11] : memref<8x128xf32, #tpu.memory_space<vmem>>, vector<8x128xf32>
    %33 = arith.mulf %23, %32 : vector<8x128xf32>
    %34 = arith.mulf %17, %25 : vector<8x128xf32>
    %35 = arith.addf %33, %34 : vector<8x128xf32>
    %36 = math.tanh %35 : vector<8x128xf32>
    %37 = arith.mulf %31, %36 : vector<8x128xf32>
    %c0_12 = arith.constant 0 : index
    %c0_13 = arith.constant 0 : index
    %38 = vector.load %arg6[%c0_12, %c0_13] : memref<8x128xf32, #tpu.memory_space<vmem>>, vector<8x128xf32>
    tpu.vector_store %arg6[%c0_12, %c0_13], %35 {strides = array<i32>} : memref<8x128xf32, #tpu.memory_space<vmem>>, vector<8x128xf32>,
    %c0_14 = arith.constant 0 : index
    %c0_15 = arith.constant 0 : index
    %39 = vector.load %arg5[%c0_14, %c0_15] : memref<8x128xf32, #tpu.memory_space<vmem>>, vector<8x128xf32>
    tpu.vector_store %arg5[%c0_14, %c0_15], %37 {strides = array<i32>} : memref<8x128xf32, #tpu.memory_space<vmem>>, vector<8x128xf32>,
    %40 = arith.index_cast %c0_i32_1 : i32 to index
    %c0_16 = arith.constant 0 : index
    %c0_17 = arith.constant 0 : index
    %41 = vector.load %arg4[%40, %c0_16, %c0_17] : memref<4x8x128xf32, #tpu.memory_space<vmem>>, vector<1x8x128xf32>
    %42 = vector.shape_cast %41 : vector<1x8x128xf32> to vector<8x128xf32>
    %43 = vector.shape_cast %37 : vector<8x128xf32> to vector<1x8x128xf32>
    tpu.vector_store %arg4[%40, %c0_16, %c0_17], %43 {strides = array<i32>} : memref<4x8x128xf32, #tpu.memory_space<vmem>>, vector<1x8x128xf32>,
    %c1_i32 = arith.constant 1 : i32
    %44 = arith.index_cast %c1_i32 : i32 to index
    %c0_18 = arith.constant 0 : index
    %c0_19 = arith.constant 0 : index
    %45 = vector.load %arg2[%44, %c0_18, %c0_19] : memref<4x8x512xbf16, #tpu.memory_space<vmem>>, vector<1x8x512xbf16>
    %46 = vector.shape_cast %45 : vector<1x8x512xbf16> to vector<8x512xbf16>
    %47 = arith.extf %46 : vector<8x512xbf16> to vector<8x512xf32>
    %c0_20 = arith.constant 0 : index
    %c0_21 = arith.constant 0 : index
    %48 = vector.load %arg5[%c0_20, %c0_21] : memref<8x128xf32, #tpu.memory_space<vmem>>, vector<8x128xf32>
    %49 = arith.truncf %48 : vector<8x128xf32> to vector<8x128xbf16>
    %c0_22 = arith.constant 0 : index
    %c0_23 = arith.constant 0 : index
    %50 = vector.load %arg3[%c0_22, %c0_23] : memref<128x512xbf16, #tpu.memory_space<vmem>>, vector<128x512xbf16>
    %cst_24 = arith.constant dense<0.000000e+00> : vector<8x512xf32>
    %51 = tpu.matmul %49, %50, %cst_24 {dimension_numbers = #tpu.dot_dimension_numbers<[1], [0], [0], [1], [0, 0, 1, 1], [], []>} : vector<8x128xbf16>, vector<128x512xbf16>, vector<8x512xf32> -> vector<8x512xf32>
    %52 = arith.addf %47, %51 : vector<8x512xf32>
    %53 = vector.extract_strided_slice %52 {offsets = [0, 0], sizes = [8, 128], strides = [1, 1]} : vector<8x512xf32> to vector<8x128xf32>
    %54 = arith.negf %53 : vector<8x128xf32>
    %55 = math.exp %54 : vector<8x128xf32>
    %cst_25 = arith.constant 1.000000e+00 : f32
    %56 = vector.broadcast %cst_25 : f32 to vector<8x128xf32>
    %57 = arith.addf %56, %55 : vector<8x128xf32>
    %58 = arith.divf %56, %57 : vector<8x128xf32>
    %59 = vector.extract_strided_slice %52 {offsets = [0, 128], sizes = [8, 128], strides = [1, 1]} : vector<8x512xf32> to vector<8x128xf32>
    %60 = arith.negf %59 : vector<8x128xf32>
    %61 = math.exp %60 : vector<8x128xf32>
    %cst_26 = arith.constant 1.000000e+00 : f32
    %62 = vector.broadcast %cst_26 : f32 to vector<8x128xf32>
    %63 = arith.addf %62, %61 : vector<8x128xf32>
    %64 = arith.divf %62, %63 : vector<8x128xf32>
    %65 = vector.extract_strided_slice %52 {offsets = [0, 256], sizes = [8, 128], strides = [1, 1]} : vector<8x512xf32> to vector<8x128xf32>
    %66 = math.tanh %65 : vector<8x128xf32>
    %67 = vector.extract_strided_slice %52 {offsets = [0, 384], sizes = [8, 128], strides = [1, 1]} : vector<8x512xf32> to vector<8x128xf32>
    %68 = arith.negf %67 : vector<8x128xf32>
    %69 = math.exp %68 : vector<8x128xf32>
    %cst_27 = arith.constant 1.000000e+00 : f32
    %70 = vector.broadcast %cst_27 : f32 to vector<8x128xf32>
    %71 = arith.addf %70, %69 : vector<8x128xf32>
    %72 = arith.divf %70, %71 : vector<8x128xf32>
    %c0_28 = arith.constant 0 : index
    %c0_29 = arith.constant 0 : index
    %73 = vector.load %arg6[%c0_28, %c0_29] : memref<8x128xf32, #tpu.memory_space<vmem>>, vector<8x128xf32>
    %74 = arith.mulf %64, %73 : vector<8x128xf32>
    %75 = arith.mulf %58, %66 : vector<8x128xf32>
    %76 = arith.addf %74, %75 : vector<8x128xf32>
    %77 = math.tanh %76 : vector<8x128xf32>
    %78 = arith.mulf %72, %77 : vector<8x128xf32>
    %c0_30 = arith.constant 0 : index
    %c0_31 = arith.constant 0 : index
    %79 = vector.load %arg6[%c0_30, %c0_31] : memref<8x128xf32, #tpu.memory_space<vmem>>, vector<8x128xf32>
    tpu.vector_store %arg6[%c0_30, %c0_31], %76 {strides = array<i32>} : memref<8x128xf32, #tpu.memory_space<vmem>>, vector<8x128xf32>,
    %c0_32 = arith.constant 0 : index
    %c0_33 = arith.constant 0 : index
    %80 = vector.load %arg5[%c0_32, %c0_33] : memref<8x128xf32, #tpu.memory_space<vmem>>, vector<8x128xf32>
    tpu.vector_store %arg5[%c0_32, %c0_33], %78 {strides = array<i32>} : memref<8x128xf32, #tpu.memory_space<vmem>>, vector<8x128xf32>,
    %81 = arith.index_cast %c1_i32 : i32 to index
    %c0_34 = arith.constant 0 : index
    %c0_35 = arith.constant 0 : index
    %82 = vector.load %arg4[%81, %c0_34, %c0_35] : memref<4x8x128xf32, #tpu.memory_space<vmem>>, vector<1x8x128xf32>
    %83 = vector.shape_cast %82 : vector<1x8x128xf32> to vector<8x128xf32>
    %84 = vector.shape_cast %78 : vector<8x128xf32> to vector<1x8x128xf32>
    tpu.vector_store %arg4[%81, %c0_34, %c0_35], %84 {strides = array<i32>} : memref<4x8x128xf32, #tpu.memory_space<vmem>>, vector<1x8x128xf32>,
    %c2_i32 = arith.constant 2 : i32
    %85 = arith.index_cast %c2_i32 : i32 to index
    %c0_36 = arith.constant 0 : index
    %c0_37 = arith.constant 0 : index
    %86 = vector.load %arg2[%85, %c0_36, %c0_37] : memref<4x8x512xbf16, #tpu.memory_space<vmem>>, vector<1x8x512xbf16>
    %87 = vector.shape_cast %86 : vector<1x8x512xbf16> to vector<8x512xbf16>
    %88 = arith.extf %87 : vector<8x512xbf16> to vector<8x512xf32>
    %c0_38 = arith.constant 0 : index
    %c0_39 = arith.constant 0 : index
    %89 = vector.load %arg5[%c0_38, %c0_39] : memref<8x128xf32, #tpu.memory_space<vmem>>, vector<8x128xf32>
    %90 = arith.truncf %89 : vector<8x128xf32> to vector<8x128xbf16>
    %c0_40 = arith.constant 0 : index
    %c0_41 = arith.constant 0 : index
    %91 = vector.load %arg3[%c0_40, %c0_41] : memref<128x512xbf16, #tpu.memory_space<vmem>>, vector<128x512xbf16>
    %cst_42 = arith.constant dense<0.000000e+00> : vector<8x512xf32>
    %92 = tpu.matmul %90, %91, %cst_42 {dimension_numbers = #tpu.dot_dimension_numbers<[1], [0], [0], [1], [0, 0, 1, 1], [], []>} : vector<8x128xbf16>, vector<128x512xbf16>, vector<8x512xf32> -> vector<8x512xf32>
    %93 = arith.addf %88, %92 : vector<8x512xf32>
    %94 = vector.extract_strided_slice %93 {offsets = [0, 0], sizes = [8, 128], strides = [1, 1]} : vector<8x512xf32> to vector<8x128xf32>
    %95 = arith.negf %94 : vector<8x128xf32>
    %96 = math.exp %95 : vector<8x128xf32>
    %cst_43 = arith.constant 1.000000e+00 : f32
    %97 = vector.broadcast %cst_43 : f32 to vector<8x128xf32>
    %98 = arith.addf %97, %96 : vector<8x128xf32>
    %99 = arith.divf %97, %98 : vector<8x128xf32>
    %100 = vector.extract_strided_slice %93 {offsets = [0, 128], sizes = [8, 128], strides = [1, 1]} : vector<8x512xf32> to vector<8x128xf32>
    %101 = arith.negf %100 : vector<8x128xf32>
    %102 = math.exp %101 : vector<8x128xf32>
    %cst_44 = arith.constant 1.000000e+00 : f32
    %103 = vector.broadcast %cst_44 : f32 to vector<8x128xf32>
    %104 = arith.addf %103, %102 : vector<8x128xf32>
    %105 = arith.divf %103, %104 : vector<8x128xf32>
    %106 = vector.extract_strided_slice %93 {offsets = [0, 256], sizes = [8, 128], strides = [1, 1]} : vector<8x512xf32> to vector<8x128xf32>
    %107 = math.tanh %106 : vector<8x128xf32>
    %108 = vector.extract_strided_slice %93 {offsets = [0, 384], sizes = [8, 128], strides = [1, 1]} : vector<8x512xf32> to vector<8x128xf32>
    %109 = arith.negf %108 : vector<8x128xf32>
    %110 = math.exp %109 : vector<8x128xf32>
    %cst_45 = arith.constant 1.000000e+00 : f32
    %111 = vector.broadcast %cst_45 : f32 to vector<8x128xf32>
    %112 = arith.addf %111, %110 : vector<8x128xf32>
    %113 = arith.divf %111, %112 : vector<8x128xf32>
    %c0_46 = arith.constant 0 : index
    %c0_47 = arith.constant 0 : index
    %114 = vector.load %arg6[%c0_46, %c0_47] : memref<8x128xf32, #tpu.memory_space<vmem>>, vector<8x128xf32>
    %115 = arith.mulf %105, %114 : vector<8x128xf32>
    %116 = arith.mulf %99, %107 : vector<8x128xf32>
    %117 = arith.addf %115, %116 : vector<8x128xf32>
    %118 = math.tanh %117 : vector<8x128xf32>
    %119 = arith.mulf %113, %118 : vector<8x128xf32>
    %c0_48 = arith.constant 0 : index
    %c0_49 = arith.constant 0 : index
    %120 = vector.load %arg6[%c0_48, %c0_49] : memref<8x128xf32, #tpu.memory_space<vmem>>, vector<8x128xf32>
    tpu.vector_store %arg6[%c0_48, %c0_49], %117 {strides = array<i32>} : memref<8x128xf32, #tpu.memory_space<vmem>>, vector<8x128xf32>,
    %c0_50 = arith.constant 0 : index
    %c0_51 = arith.constant 0 : index
    %121 = vector.load %arg5[%c0_50, %c0_51] : memref<8x128xf32, #tpu.memory_space<vmem>>, vector<8x128xf32>
    tpu.vector_store %arg5[%c0_50, %c0_51], %119 {strides = array<i32>} : memref<8x128xf32, #tpu.memory_space<vmem>>, vector<8x128xf32>,
    %122 = arith.index_cast %c2_i32 : i32 to index
    %c0_52 = arith.constant 0 : index
    %c0_53 = arith.constant 0 : index
    %123 = vector.load %arg4[%122, %c0_52, %c0_53] : memref<4x8x128xf32, #tpu.memory_space<vmem>>, vector<1x8x128xf32>
    %124 = vector.shape_cast %123 : vector<1x8x128xf32> to vector<8x128xf32>
    %125 = vector.shape_cast %119 : vector<8x128xf32> to vector<1x8x128xf32>
    tpu.vector_store %arg4[%122, %c0_52, %c0_53], %125 {strides = array<i32>} : memref<4x8x128xf32, #tpu.memory_space<vmem>>, vector<1x8x128xf32>,
    %c3_i32 = arith.constant 3 : i32
    %126 = arith.index_cast %c3_i32 : i32 to index
    %c0_54 = arith.constant 0 : index
    %c0_55 = arith.constant 0 : index
    %127 = vector.load %arg2[%126, %c0_54, %c0_55] : memref<4x8x512xbf16, #tpu.memory_space<vmem>>, vector<1x8x512xbf16>
    %128 = vector.shape_cast %127 : vector<1x8x512xbf16> to vector<8x512xbf16>
    %129 = arith.extf %128 : vector<8x512xbf16> to vector<8x512xf32>
    %c0_56 = arith.constant 0 : index
    %c0_57 = arith.constant 0 : index
    %130 = vector.load %arg5[%c0_56, %c0_57] : memref<8x128xf32, #tpu.memory_space<vmem>>, vector<8x128xf32>
    %131 = arith.truncf %130 : vector<8x128xf32> to vector<8x128xbf16>
    %c0_58 = arith.constant 0 : index
    %c0_59 = arith.constant 0 : index
    %132 = vector.load %arg3[%c0_58, %c0_59] : memref<128x512xbf16, #tpu.memory_space<vmem>>, vector<128x512xbf16>
    %cst_60 = arith.constant dense<0.000000e+00> : vector<8x512xf32>
    %133 = tpu.matmul %131, %132, %cst_60 {dimension_numbers = #tpu.dot_dimension_numbers<[1], [0], [0], [1], [0, 0, 1, 1], [], []>} : vector<8x128xbf16>, vector<128x512xbf16>, vector<8x512xf32> -> vector<8x512xf32>
    %134 = arith.addf %129, %133 : vector<8x512xf32>
    %135 = vector.extract_strided_slice %134 {offsets = [0, 0], sizes = [8, 128], strides = [1, 1]} : vector<8x512xf32> to vector<8x128xf32>
    %136 = arith.negf %135 : vector<8x128xf32>
    %137 = math.exp %136 : vector<8x128xf32>
    %cst_61 = arith.constant 1.000000e+00 : f32
    %138 = vector.broadcast %cst_61 : f32 to vector<8x128xf32>
    %139 = arith.addf %138, %137 : vector<8x128xf32>
    %140 = arith.divf %138, %139 : vector<8x128xf32>
    %141 = vector.extract_strided_slice %134 {offsets = [0, 128], sizes = [8, 128], strides = [1, 1]} : vector<8x512xf32> to vector<8x128xf32>
    %142 = arith.negf %141 : vector<8x128xf32>
    %143 = math.exp %142 : vector<8x128xf32>
    %cst_62 = arith.constant 1.000000e+00 : f32
    %144 = vector.broadcast %cst_62 : f32 to vector<8x128xf32>
    %145 = arith.addf %144, %143 : vector<8x128xf32>
    %146 = arith.divf %144, %145 : vector<8x128xf32>
    %147 = vector.extract_strided_slice %134 {offsets = [0, 256], sizes = [8, 128], strides = [1, 1]} : vector<8x512xf32> to vector<8x128xf32>
    %148 = math.tanh %147 : vector<8x128xf32>
    %149 = vector.extract_strided_slice %134 {offsets = [0, 384], sizes = [8, 128], strides = [1, 1]} : vector<8x512xf32> to vector<8x128xf32>
    %150 = arith.negf %149 : vector<8x128xf32>
    %151 = math.exp %150 : vector<8x128xf32>
    %cst_63 = arith.constant 1.000000e+00 : f32
    %152 = vector.broadcast %cst_63 : f32 to vector<8x128xf32>
    %153 = arith.addf %152, %151 : vector<8x128xf32>
    %154 = arith.divf %152, %153 : vector<8x128xf32>
    %c0_64 = arith.constant 0 : index
    %c0_65 = arith.constant 0 : index
    %155 = vector.load %arg6[%c0_64, %c0_65] : memref<8x128xf32, #tpu.memory_space<vmem>>, vector<8x128xf32>
    %156 = arith.mulf %146, %155 : vector<8x128xf32>
    %157 = arith.mulf %140, %148 : vector<8x128xf32>
    %158 = arith.addf %156, %157 : vector<8x128xf32>
    %159 = math.tanh %158 : vector<8x128xf32>
    %160 = arith.mulf %154, %159 : vector<8x128xf32>
    %c0_66 = arith.constant 0 : index
    %c0_67 = arith.constant 0 : index
    %161 = vector.load %arg6[%c0_66, %c0_67] : memref<8x128xf32, #tpu.memory_space<vmem>>, vector<8x128xf32>
    tpu.vector_store %arg6[%c0_66, %c0_67], %158 {strides = array<i32>} : memref<8x128xf32, #tpu.memory_space<vmem>>, vector<8x128xf32>,
    %c0_68 = arith.constant 0 : index
    %c0_69 = arith.constant 0 : index
    %162 = vector.load %arg5[%c0_68, %c0_69] : memref<8x128xf32, #tpu.memory_space<vmem>>, vector<8x128xf32>
    tpu.vector_store %arg5[%c0_68, %c0_69], %160 {strides = array<i32>} : memref<8x128xf32, #tpu.memory_space<vmem>>, vector<8x128xf32>,
    %163 = arith.index_cast %c3_i32 : i32 to index
    %c0_70 = arith.constant 0 : index
    %c0_71 = arith.constant 0 : index
    %164 = vector.load %arg4[%163, %c0_70, %c0_71] : memref<4x8x128xf32, #tpu.memory_space<vmem>>, vector<1x8x128xf32>
    %165 = vector.shape_cast %164 : vector<1x8x128xf32> to vector<8x128xf32>
    %166 = vector.shape_cast %160 : vector<8x128xf32> to vector<1x8x128xf32>
    tpu.vector_store %arg4[%163, %c0_70, %c0_71], %166 {strides = array<i32>} : memref<4x8x128xf32, #tpu.memory_space<vmem>>, vector<1x8x128xf32>,
    %c4_i32 = arith.constant 4 : i32
    return
  }
  func.func @transform_0(%arg0: i32, %arg1: i32) -> (i32, i32, i32) {
    %c0_i32 = arith.constant 0 : i32
    %c0_i32_0 = arith.constant 0 : i32
    return %arg1, %arg0, %c0_i32 : i32, i32, i32
  }
  func.func @transform_1(%arg0: i32, %arg1: i32) -> (i32, i32) {
    %c0_i32 = arith.constant 0 : i32
    %c0_i32_0 = arith.constant 0 : i32
    %c0_i32_1 = arith.constant 0 : i32
    return %c0_i32, %c0_i32_0 : i32, i32
  }
  func.func @transform_2(%arg0: i32, %arg1: i32) -> (i32, i32, i32) {
    %c0_i32 = arith.constant 0 : i32
    %c0_i32_0 = arith.constant 0 : i32
    return %arg1, %arg0, %c0_i32 : i32, i32, i32
  }
}

</mosaic_0001>

<llo_original>
// kernel: tpu_custom_call.1
$region0: #{tpu_custom_call.1}
  #allocation0 [shape = 'u32[]', space=smem, size = 0x4, offset = 0x4, fixed_abs, tag = 'smem constant byte address 0x4 - core index']
  #allocation1 [shape = 'u32[144,128]{1,0:T(1,128)}', space=vmem, size = 0x12000, scoped, tag = 'internal scratch']
  #allocation2 [shape = 'f32[8,128]{1,0:T(8,128)}', space=vmem, size = 0x1000, scoped, tag = 'scratch operand']
  #allocation3 [shape = 'f32[8,128]{1,0:T(8,128)}', space=vmem, size = 0x1000, scoped, tag = 'scratch operand']
  %s0 = inlined_call_operand.hbm [shape: bf16[8,8,512], index: 0, kind: input, shape index: {}]
  %s1 = inlined_call_operand.hbm [shape: bf16[128,512], index: 1, kind: input, shape index: {}]
  %s2 = inlined_call_operand.hbm [shape: f32[8,8,128], index: 2, kind: output, shape index: {}]
  %s3 = sld [smem:[#allocation0]]
  $region53: #{tpu_custom_call.1} parent=0
    _
  %s5 = ssub.s32 1, %s3
  %s6 = scalar_select 0, %s5, %s3
  $region1: #{tpu_custom_call.1} parent=0
    #allocation4 [shape = 'u8[65536]{0}', space=vmem, size = 0x10000, scoped, tag = 'input window, operand 0']
    #allocation5 [shape = 's32[2]{0}', space=sflag, size = 0x8, scoped, tag = 'scoped memory for tpu_custom_call.1']
    #allocation6 [shape = 's32[2]{0}', space=sflag, size = 0x8, scoped, tag = 'scoped memory for tpu_custom_call.1']
    #allocation7 [shape = 'u8[131072]{0}', space=vmem, size = 0x20000, scoped, tag = 'input window, operand 1, single buffered']
    #allocation8 [shape = 's32[1]{0}', space=sflag, size = 0x4, scoped, tag = 'scoped memory for tpu_custom_call.1']
    #allocation9 [shape = 'u8[32768]{0}', space=vmem, size = 0x8000, scoped, tag = 'output window, operand 0']
    %7 = vsyncpa [#allocation5], 0
    %s8 = scalar_lea.sflag [#allocation5], 1
    %9 = vsyncpa %s8, 0
    %10 = vsyncpa [#allocation8], 0
    %11 = vsyncpa [#allocation6], 0
    %s12 = scalar_lea.sflag [#allocation6], 1
    %13 = vsyncpa %s12, 0
    loop: start=0, step=1, limit=4
    $region2: #{tpu_custom_call.1} parent=1 // loop_pre_header
      _
    $region3: #{tpu_custom_call.1} parent=1 // loop_header
      %s15 = sphi 0, %s19
      %p16 = scmp.ge.s32.totalorder %s15, 4
      %s22 = sphi 0, %s34
      %s23 = sphi 0, %s30
      %s24 = sphi 0, %s22
      %s25 = sphi 0, %s23
      %s26 = sphi 0, %s24
      %s27 = sphi 0, %s25
      %s39 = sphi 0, %s41
      %s42 = sphi 0, %s39
      %s43 = sphi 0, %s42
      %s59 = sphi 0, %s43
      %s63 = sphi 0, %s63
      %s65 = sphi 0, %s63
      %s66 = sphi 0, %s65
      %s80 = sphi 0, %s66
      %s88 = sphi 0, %s90
      %s91 = sphi 0, %s88
      %s92 = sphi 0, %s91
      %s108 = sphi 0, %s92
    $region4: #{tpu_custom_call.1} parent=1 // loop_header_branch
      %18 = sbr.rel (%p16) target = $region8
    $region5: #{tpu_custom_call.1} parent=1 // loop_body
      %s20 = ssub.s32 %s15, 1
      %s21 = ssub.s32 %s15, 2
      %s28 = sadd.s32 1, %s23
      %p29 = scmp.ge.s32.totalorder %s28, 2
      %s30 = scalar_select %p29, 0, %s28
      %s31 = sadd.s32 1, %s22
      %s32 = scalar_select %p29, %s31, %s22
      %p33 = scmp.ge.s32.totalorder %s32, 1
      %s34 = scalar_select %p33, 0, %s32
      %s35 = ssub.s32 %s23, %s30
      %s36 = ssub.s32 %s22, %s34
      %s37 = sor.u32 %s35, %s36
      %p38 = scmp.eq.s32.totalorder %s37, 0
      %s40 = sadd.s32 %s39, 1
      %s41 = scalar_select %p38, %s39, %s40
      %p44 = pneg %p38
      %p45 = scmp.eq.s32.totalorder %s15, 1
      %p46 = por %p44, %p45
      %p47 = scmp.ne.s32.totalorder %s39, %s42
      %p48 = scmp.eq.s32.totalorder %s15, 0
      %p49 = por %p47, %p48
      %p50 = scmp.ne.s32.totalorder %s39, %s42
      %p51 = scmp.eq.s32.totalorder %s20, 1
      %p52 = por %p50, %p51
      %p53 = scmp.ne.s32.totalorder %s42, %s43
      %p54 = scmp.eq.s32.totalorder %s20, 0
      %p55 = por %p53, %p54
      %p56 = scmp.ne.s32.totalorder %s42, %s43
      %p57 = scmp.eq.s32.totalorder %s21, 1
      %p58 = por %p56, %p57
      %p60 = scmp.ne.s32.totalorder %s43, %s59
      %p61 = scmp.eq.s32.totalorder %s21, 0
      %p62 = por %p60, %p61
      %s64 = sadd.s32 %s63, 1
      %p67 = scmp.eq.s32.totalorder %s15, 1
      %p68 = scmp.ne.s32.totalorder %s63, %s65
      %p69 = scmp.eq.s32.totalorder %s15, 0
      %p70 = por %p68, %p69
      %p71 = scmp.ne.s32.totalorder %s63, %s65
      %p72 = scmp.eq.s32.totalorder %s20, 1
      %p73 = por %p71, %p72
      %p74 = scmp.ne.s32.totalorder %s65, %s66
      %p75 = scmp.eq.s32.totalorder %s20, 0
      %p76 = por %p74, %p75
      %p77 = scmp.ne.s32.totalorder %s65, %s66
      %p78 = scmp.eq.s32.totalorder %s21, 1
      %p79 = por %p77, %p78
      %p81 = scmp.ne.s32.totalorder %s66, %s80
      %p82 = scmp.eq.s32.totalorder %s21, 0
      %p83 = por %p81, %p82
      %s84 = ssub.s32 %s23, %s30
      %s85 = ssub.s32 %s22, %s34
      %s86 = sor.u32 %s84, %s85
      %p87 = scmp.eq.s32.totalorder %s86, 0
      %s89 = sadd.s32 %s88, 1
      %s90 = scalar_select %p87, %s88, %s89
      %p93 = pneg %p87
      %p94 = scmp.eq.s32.totalorder %s15, 1
      %p95 = por %p93, %p94
      %p96 = scmp.ne.s32.totalorder %s88, %s91
      %p97 = scmp.eq.s32.totalorder %s15, 0
      %p98 = por %p96, %p97
      %p99 = scmp.ne.s32.totalorder %s88, %s91
      %p100 = scmp.eq.s32.totalorder %s20, 1
      %p101 = por %p99, %p100
      %p102 = scmp.ne.s32.totalorder %s91, %s92
      %p103 = scmp.eq.s32.totalorder %s20, 0
      %p104 = por %p102, %p103
      %p105 = scmp.ne.s32.totalorder %s91, %s92
      %p106 = scmp.eq.s32.totalorder %s21, 1
      %p107 = por %p105, %p106
      %p109 = scmp.ne.s32.totalorder %s92, %s108
      %p110 = scmp.eq.s32.totalorder %s21, 0
      %p111 = por %p109, %p110
      %p112 = scmp.le.s32.totalorder 1, %s15
      %p113 = scmp.lt.s32.totalorder %s15, 3
      %p114 = pnand %p112, %p113
      %p115 = pneg %p114
      // Predicated region
      $region9: #{tpu_custom_call.1} parent=5 // pred_check
        _
      $region10: #{tpu_custom_call.1} parent=5 // pred_check_branch
        %117 = sbr.rel (%p114) target = $region12
      $region11: #{tpu_custom_call.1} parent=5 // pred_region
        %s118 = ssub.s32 %s15, 1
        // Predicated region
        $region13: #{tpu_custom_call.1} parent=11 // pred_check
          %p119 = pneg %p76
        $region14: #{tpu_custom_call.1} parent=11 // pred_check_branch
          %121 = sbr.rel (%p119) target = $region16
        $region15: #{tpu_custom_call.1} parent=11 // pred_region
          %s123 = ssub.s32 4096, 4096
          %124 = vsyncadd [#allocation8], %s123
          %s125 = sshll.u32 [#allocation7], 4
          %s126 = int_to_ptr.vmem [resolvable:$true] %s125
          %131 = dma.hbm_to_vmem [thread:$0]  %s1, 4096, %s126, [#allocation8], 256, 256, 16
        $region16: #{tpu_custom_call.1} parent=11 // pred_fallthru
          _
      $region12: #{tpu_custom_call.1} parent=5 // pred_fallthru
        _
      %p132 = scmp.lt.s32.totalorder %s15, 2
      // Predicated region
      $region17: #{tpu_custom_call.1} parent=5 // pred_check
        %p133 = pneg %p132
      $region18: #{tpu_custom_call.1} parent=5 // pred_check_branch
        %135 = sbr.rel (%p133) target = $region20
      $region19: #{tpu_custom_call.1} parent=5 // pred_region
        // Predicated region
        $region21: #{tpu_custom_call.1} parent=19 // pred_check
          %p136 = pneg %p49
        $region22: #{tpu_custom_call.1} parent=19 // pred_check_branch
          %138 = sbr.rel (%p136) target = $region24
        $region23: #{tpu_custom_call.1} parent=19 // pred_region
          %s139 = sand.u32 %s39, 1
          %s140 = scalar_lea.sflag [#allocation5], %s139
          %s141 = sand.u32 %s39, 1
          %s142 = smul.addr %s141, 64
          %s143 = scalar_lea.vmem [#allocation4], %s142
          %s144 = smul.u32 4, %s23
          %s146 = ssub.s32 1024, 1024
          %147 = vsyncadd %s140, %s146
          %s148 = smul.addr %s22, 4
          %s149 = smul.addr %s144, 4
          %s150 = sadd.s32 %s148, %s149
          %s151 = smul.addr %s150, 64
          %s152 = scalar_lea.hbm %s0, %s151
          %s153 = sshll.u32 %s143, 4
          %s154 = int_to_ptr.vmem [resolvable:$true] %s153
          %159 = dma.hbm_to_vmem [thread:$0]  %s152, 1024, %s154, %s140, 256, 256, 16
        $region24: #{tpu_custom_call.1} parent=19 // pred_fallthru
          _
      $region20: #{tpu_custom_call.1} parent=5 // pred_fallthru
        _
      %p160 = scmp.le.s32.totalorder 1, %s15
      %p161 = scmp.lt.s32.totalorder %s15, 3
      %p162 = pnand %p160, %p161
      %p163 = pneg %p162
      // Predicated region
      $region25: #{tpu_custom_call.1} parent=5 // pred_check
        _
      $region26: #{tpu_custom_call.1} parent=5 // pred_check_branch
        %165 = sbr.rel (%p162) target = $region28
      $region27: #{tpu_custom_call.1} parent=5 // pred_region
        %s166 = ssub.s32 %s15, 1
        %s167 = sand.u32 %s42, 1
        %s168 = scalar_lea.sflag [#allocation5], %s167
        %s169 = sand.u32 %s42, 1
        %s170 = smul.addr %s169, 64
        %s171 = scalar_lea.vmem [#allocation4], %s170
        // Predicated region
        $region29: #{tpu_custom_call.1} parent=27 // pred_check
          %p172 = pneg %p55
        $region30: #{tpu_custom_call.1} parent=27 // pred_check_branch
          %174 = sbr.rel (%p172) target = $region32
        $region31: #{tpu_custom_call.1} parent=27 // pred_region
          %175 = dma.done %s168, 1024
        $region32: #{tpu_custom_call.1} parent=27 // pred_fallthru
          _
        // Predicated region
        $region33: #{tpu_custom_call.1} parent=27 // pred_check
          %p176 = pneg %p76
        $region34: #{tpu_custom_call.1} parent=27 // pred_check_branch
          %178 = sbr.rel (%p176) target = $region36
        $region35: #{tpu_custom_call.1} parent=27 // pred_region
          %179 = dma.done [#allocation8], 4096
        $region36: #{tpu_custom_call.1} parent=27 // pred_fallthru
          _
        %s180 = sand.u32 %s42, 1
        %s181 = scalar_lea.sflag [#allocation5], %s180
        %s182 = sand.u32 %s42, 1
        %s183 = smul.addr %s182, 64
        %s184 = scalar_lea.vmem [#allocation4], %s183
        %p185 = pneg %p55
        %p186 = pneg %p52
        %p187 = pneg %p76
        %p188 = pneg %p73
        %p189 = pneg %p104
        %p190 = pneg %p101
        %s191 = sand.u32 %s91, 1
        %s192 = scalar_lea.sflag [#allocation6], %s191
        %s193 = sand.u32 %s91, 1
        %s194 = smul.addr %s193, 32
        %s195 = scalar_lea.vmem [#allocation9], %s194
        %s196 = smul.u32 4, %s25
        %s197 = smul.u32 4, %s25
        %p199 = scmp.eq.s32.totalorder %s25, 0
        // Predicated region
        $region37: #{tpu_custom_call.1} parent=27 // pred_check
          %p200 = pneg %p199
        $region38: #{tpu_custom_call.1} parent=27 // pred_check_branch
          %202 = sbr.rel (%p200) target = $region40
        $region39: #{tpu_custom_call.1} parent=27 // pred_region
          %203 = vst [vmem:[#allocation2] sm:$0xff] 0.0
          %204 = vst [vmem:[#allocation3] sm:$0xff] 0.0
        $region40: #{tpu_custom_call.1} parent=27 // pred_fallthru
          _
        %v205 = vld [vmem:[%s171] sm:$0xff]
        %v206 = vld [vmem:[%s171 + $0x8] sm:$0xff]
        %v207 = vunpack.c.l.bf16 %v205
        %v208 = vunpack.c.h.bf16 %v205
        %v209 = vunpack.c.l.bf16 %v206
        %v210 = vunpack.c.h.bf16 %v206
        %v211 = vld [vmem:[#allocation2] sm:$0xff]
        %v212 = vpack.c.bf16 %v211, %v211
        %v213 = vld [vmem:[#allocation7] sm:$0xff]
        %v214 = vld [vmem:[#allocation7 + $0x8] sm:$0xff]
        %v215 = vld [vmem:[#allocation7 + $0x10] sm:$0xff]
        %v216 = vld [vmem:[#allocation7 + $0x18] sm:$0xff]
        %v217 = vld [vmem:[#allocation7 + $0x20] sm:$0xff]
        %v218 = vld [vmem:[#allocation7 + $0x28] sm:$0xff]
        %v219 = vld [vmem:[#allocation7 + $0x30] sm:$0xff]
        %v220 = vld [vmem:[#allocation7 + $0x38] sm:$0xff]
        %v221 = vld [vmem:[#allocation7 + $0x40] sm:$0xff]
        %v222 = vld [vmem:[#allocation7 + $0x48] sm:$0xff]
        %v223 = vld [vmem:[#allocation7 + $0x50] sm:$0xff]
        %v224 = vld [vmem:[#allocation7 + $0x58] sm:$0xff]
        %v225 = vld [vmem:[#allocation7 + $0x60] sm:$0xff]
        %v226 = vld [vmem:[#allocation7 + $0x68] sm:$0xff]
        %v227 = vld [vmem:[#allocation7 + $0x70] sm:$0xff]
        %v228 = vld [vmem:[#allocation7 + $0x78] sm:$0xff]
        %v229 = vld [vmem:[#allocation7 + $0x80] sm:$0xff]
        %v230 = vld [vmem:[#allocation7 + $0x88] sm:$0xff]
        %v231 = vld [vmem:[#allocation7 + $0x90] sm:$0xff]
        %v232 = vld [vmem:[#allocation7 + $0x98] sm:$0xff]
        %v233 = vld [vmem:[#allocation7 + $0xa0] sm:$0xff]
        %v234 = vld [vmem:[#allocation7 + $0xa8] sm:$0xff]
        %v235 = vld [vmem:[#allocation7 + $0xb0] sm:$0xff]
        %v236 = vld [vmem:[#allocation7 + $0xb8] sm:$0xff]
        %v237 = vld [vmem:[#allocation7 + $0xc0] sm:$0xff]
        %v238 = vld [vmem:[#allocation7 + $0xc8] sm:$0xff]
        %v239 = vld [vmem:[#allocation7 + $0xd0] sm:$0xff]
        %v240 = vld [vmem:[#allocation7 + $0xd8] sm:$0xff]
        %v241 = vld [vmem:[#allocation7 + $0xe0] sm:$0xff]
        %v242 = vld [vmem:[#allocation7 + $0xe8] sm:$0xff]
        %v243 = vld [vmem:[#allocation7 + $0xf0] sm:$0xff]
        %v244 = vld [vmem:[#allocation7 + $0xf8] sm:$0xff]
        %v277 = vunpack.c.l.b16 %v213
        %v278 = vunpack.c.h.b16 %v213
        %v279 = vunpack.c.l.b16 %v214
        %v280 = vunpack.c.h.b16 %v214
        %v281 = vunpack.c.l.b16 %v215
        %v282 = vunpack.c.h.b16 %v215
        %v283 = vunpack.c.l.b16 %v216
        %v284 = vunpack.c.h.b16 %v216
        %v285 = vunpack.c.l.b16 %v217
        %v286 = vunpack.c.h.b16 %v217
        %v287 = vunpack.c.l.b16 %v218
        %v288 = vunpack.c.h.b16 %v218
        %v289 = vunpack.c.l.b16 %v219
        %v290 = vunpack.c.h.b16 %v219
        %v291 = vunpack.c.l.b16 %v220
        %v292 = vunpack.c.h.b16 %v220
        %v293 = vunpack.c.l.b16 %v221
        %v294 = vunpack.c.h.b16 %v221
        %v295 = vunpack.c.l.b16 %v222
        %v296 = vunpack.c.h.b16 %v222
        %v297 = vunpack.c.l.b16 %v223
        %v298 = vunpack.c.h.b16 %v223
        %v299 = vunpack.c.l.b16 %v224
        %v300 = vunpack.c.h.b16 %v224
        %v301 = vunpack.c.l.b16 %v225
        %v302 = vunpack.c.h.b16 %v225
        %v303 = vunpack.c.l.b16 %v226
        %v304 = vunpack.c.h.b16 %v226
        %v305 = vunpack.c.l.b16 %v227
        %v306 = vunpack.c.h.b16 %v227
        %v307 = vunpack.c.l.b16 %v228
        %v308 = vunpack.c.h.b16 %v228
        %v309 = vunpack.c.l.b16 %v229
        %v310 = vunpack.c.h.b16 %v229
        %v311 = vunpack.c.l.b16 %v230
        %v312 = vunpack.c.h.b16 %v230
        %v313 = vunpack.c.l.b16 %v231
        %v314 = vunpack.c.h.b16 %v231
        %v315 = vunpack.c.l.b16 %v232
        %v316 = vunpack.c.h.b16 %v232
        %v317 = vunpack.c.l.b16 %v233
        %v318 = vunpack.c.h.b16 %v233
        %v319 = vunpack.c.l.b16 %v234
        %v320 = vunpack.c.h.b16 %v234
        %v321 = vunpack.c.l.b16 %v235
        %v322 = vunpack.c.h.b16 %v235
        %v323 = vunpack.c.l.b16 %v236
        %v324 = vunpack.c.h.b16 %v236
        %v325 = vunpack.c.l.b16 %v237
        %v326 = vunpack.c.h.b16 %v237
        %v327 = vunpack.c.l.b16 %v238
        %v328 = vunpack.c.h.b16 %v238
        %v329 = vunpack.c.l.b16 %v239
        %v330 = vunpack.c.h.b16 %v239
        %v331 = vunpack.c.l.b16 %v240
        %v332 = vunpack.c.h.b16 %v240
        %v333 = vunpack.c.l.b16 %v241
        %v334 = vunpack.c.h.b16 %v241
        %v335 = vunpack.c.l.b16 %v242
        %v336 = vunpack.c.h.b16 %v242
        %v337 = vunpack.c.l.b16 %v243
        %v338 = vunpack.c.h.b16 %v243
        %v339 = vunpack.c.l.b16 %v244
        %v340 = vunpack.c.h.b16 %v244
        %v341 = vpack.c.b16 %v281, %v277
        %v342 = vpack.c.b16 %v282, %v278
        %v343 = vpack.c.b16 %v283, %v279
        %v344 = vpack.c.b16 %v284, %v280
        %v345 = vpack.c.b16 %v289, %v285
        %v346 = vpack.c.b16 %v290, %v286
        %v347 = vpack.c.b16 %v291, %v287
        %v348 = vpack.c.b16 %v292, %v288
        %v349 = vpack.c.b16 %v297, %v293
        %v350 = vpack.c.b16 %v298, %v294
        %v351 = vpack.c.b16 %v299, %v295
        %v352 = vpack.c.b16 %v300, %v296
        %v353 = vpack.c.b16 %v305, %v301
        %v354 = vpack.c.b16 %v306, %v302
        %v355 = vpack.c.b16 %v307, %v303
        %v356 = vpack.c.b16 %v308, %v304
        %v357 = vpack.c.b16 %v313, %v309
        %v358 = vpack.c.b16 %v314, %v310
        %v359 = vpack.c.b16 %v315, %v311
        %v360 = vpack.c.b16 %v316, %v312
        %v361 = vpack.c.b16 %v321, %v317
        %v362 = vpack.c.b16 %v322, %v318
        %v363 = vpack.c.b16 %v323, %v319
        %v364 = vpack.c.b16 %v324, %v320
        %v365 = vpack.c.b16 %v329, %v325
        %v366 = vpack.c.b16 %v330, %v326
        %v367 = vpack.c.b16 %v331, %v327
        %v368 = vpack.c.b16 %v332, %v328
        %v369 = vpack.c.b16 %v337, %v333
        %v370 = vpack.c.b16 %v338, %v334
        %v371 = vpack.c.b16 %v339, %v335
        %v372 = vpack.c.b16 %v340, %v336
        %405 = vmatprep.subr.bf16.mxu0 %v342
        %406 = vmatpush1.bf16.msra.mxu0 %v341
        %407 = vmatprep.subr.bf16.mxu0 %v346
        %408 = vmatpush1.bf16.msra.mxu0 %v345
        %409 = vmatprep.subr.bf16.mxu0 %v350
        %410 = vmatpush1.bf16.msra.mxu0 %v349
        %411 = vmatprep.subr.bf16.mxu0 %v354
        %412 = vmatpush1.bf16.msra.mxu0 %v353
        %413 = vmatprep.subr.bf16.mxu0 %v358
        %414 = vmatpush1.bf16.msra.mxu0 %v357
        %415 = vmatprep.subr.bf16.mxu0 %v362
        %416 = vmatpush1.bf16.msra.mxu0 %v361
        %417 = vmatprep.subr.bf16.mxu0 %v366
        %418 = vmatpush1.bf16.msra.mxu0 %v365
        %419 = vmatprep.subr.bf16.mxu0 %v370
        %420 = vmatpush1.bf16.msra.mxu0 %v369
        %421 = vmatprep.subr.bf16.mxu0 0
        %422 = vmatpush1.bf16.msra.mxu0 0
        %423 = vmatprep.subr.bf16.mxu0 0
        %424 = vmatpush1.bf16.msra.mxu0 0
        %425 = vmatprep.subr.bf16.mxu0 0
        %426 = vmatpush1.bf16.msra.mxu0 0
        %427 = vmatprep.subr.bf16.mxu0 0
        %428 = vmatpush1.bf16.msra.mxu0 0
        %429 = vmatprep.subr.bf16.mxu0 0
        %430 = vmatpush1.bf16.msra.mxu0 0
        %431 = vmatprep.subr.bf16.mxu0 0
        %432 = vmatpush1.bf16.msra.mxu0 0
        %433 = vmatprep.subr.bf16.mxu0 0
        %434 = vmatpush1.bf16.msra.mxu0 0
        %435 = vmatprep.subr.bf16.mxu0 0
        %436 = vmatpush1.bf16.msra.mxu0 0
        %437 = vmatprep.mubr.bf16.mxu0 0
        %438 = vmatmul.mubr.bf16.gmra.mrb[0].mxu0 %v212
        %v439 = vpop.f32.mrb[0].mxu0
        %v440 = vadd.f32 0.0, %v439
        %v441 = vpop.f32.mrb[0].mxu0
        %v442 = vadd.f32 0.0, %v441
        %v443 = vpop.f32.mrb[0].mxu0
        %v444 = vpop.f32.mrb[0].mxu0
        %445 = vdwg.mxu0
        %446 = vmatprep.subr.bf16.mxu0 %v344
        %447 = vmatpush1.bf16.msra.mxu0 %v343
        %448 = vmatprep.subr.bf16.mxu0 %v348
        %449 = vmatpush1.bf16.msra.mxu0 %v347
        %450 = vmatprep.subr.bf16.mxu0 %v352
        %451 = vmatpush1.bf16.msra.mxu0 %v351
        %452 = vmatprep.subr.bf16.mxu0 %v356
        %453 = vmatpush1.bf16.msra.mxu0 %v355
        %454 = vmatprep.subr.bf16.mxu0 %v360
        %455 = vmatpush1.bf16.msra.mxu0 %v359
        %456 = vmatprep.subr.bf16.mxu0 %v364
        %457 = vmatpush1.bf16.msra.mxu0 %v363
        %458 = vmatprep.subr.bf16.mxu0 %v368
        %459 = vmatpush1.bf16.msra.mxu0 %v367
        %460 = vmatprep.subr.bf16.mxu0 %v372
        %461 = vmatpush1.bf16.msra.mxu0 %v371
        %462 = vmatprep.subr.bf16.mxu0 0
        %463 = vmatpush1.bf16.msra.mxu0 0
        %464 = vmatprep.subr.bf16.mxu0 0
        %465 = vmatpush1.bf16.msra.mxu0 0
        %466 = vmatprep.subr.bf16.mxu0 0
        %467 = vmatpush1.bf16.msra.mxu0 0
        %468 = vmatprep.subr.bf16.mxu0 0
        %469 = vmatpush1.bf16.msra.mxu0 0
        %470 = vmatprep.subr.bf16.mxu0 0
        %471 = vmatpush1.bf16.msra.mxu0 0
        %472 = vmatprep.subr.bf16.mxu0 0
        %473 = vmatpush1.bf16.msra.mxu0 0
        %474 = vmatprep.subr.bf16.mxu0 0
        %475 = vmatpush1.bf16.msra.mxu0 0
        %476 = vmatprep.subr.bf16.mxu0 0
        %477 = vmatpush1.bf16.msra.mxu0 0
        %478 = vmatprep.mubr.bf16.mxu0 0
        %479 = vmatmul.mubr.bf16.gmra.mrb[0].mxu0 %v212
        %v480 = vpop.f32.mrb[0].mxu0
        %v481 = vadd.f32 0.0, %v480
        %v482 = vpop.f32.mrb[0].mxu0
        %v483 = vadd.f32 0.0, %v482
        %v484 = vpop.f32.mrb[0].mxu0
        %v485 = vpop.f32.mrb[0].mxu0
        %486 = vdwg.mxu0
        %v487 = vadd.f32 %v207, %v440
        %v488 = vadd.f32 %v208, %v442
        %v489 = vadd.f32 %v209, %v481
        %v490 = vadd.f32 %v210, %v483
        %v491 = vxor.u32 %v487, 2147483648
        %v492 = vmul.f32 %v491, 1.442695
        %v493 = vpow.pop %v492
        %v494 = vadd.f32 %v493, 1.0
        %v495 = vrcp.pop %v494
        %v496 = vmul.f32 1.0, %v495
        %v497 = vxor.u32 %v488, 2147483648
        %v498 = vmul.f32 %v497, 1.442695
        %v499 = vpow.pop %v498
        %v500 = vadd.f32 %v499, 1.0
        %v501 = vrcp.pop %v500
        %v502 = vmul.f32 1.0, %v501
        %v503 = vtanh.pop %v489
        %v504 = vxor.u32 %v490, 2147483648
        %v505 = vmul.f32 %v504, 1.442695
        %v506 = vpow.pop %v505
        %v507 = vadd.f32 %v506, 1.0
        %v508 = vrcp.pop %v507
        %v509 = vmul.f32 1.0, %v508
        %v510 = vld [vmem:[#allocation3] sm:$0xff]
        %v511 = vmul.f32 %v502, %v510
        %v512 = vmul.f32 %v496, %v503
        %v513 = vadd.f32 %v511, %v512
        %v514 = vtanh.pop %v513
        %v515 = vmul.f32 %v509, %v514
        %516 = vst [vmem:[#allocation3] sm:$0xff] %v513
        %517 = vst [vmem:[#allocation2] sm:$0xff] %v515
        %518 = vst [vmem:[%s195] sm:$0xff] %v515
        %s519 = scalar_lea.vmem %s171, 16 [#allocation4]
        %v520 = vld [vmem:[%s519] sm:$0xff]
        %v521 = vld [vmem:[%s519 + $0x8] sm:$0xff]
        %v522 = vunpack.c.l.bf16 %v520
        %v523 = vunpack.c.h.bf16 %v520
        %v524 = vunpack.c.l.bf16 %v521
        %v525 = vunpack.c.h.bf16 %v521
        %v526 = vld [vmem:[#allocation2] sm:$0xff]
        %v527 = vpack.c.bf16 %v526, %v526
        %v528 = vld [vmem:[#allocation7] sm:$0xff]
        %v529 = vld [vmem:[#allocation7 + $0x8] sm:$0xff]
        %v530 = vld [vmem:[#allocation7 + $0x10] sm:$0xff]
        %v531 = vld [vmem:[#allocation7 + $0x18] sm:$0xff]
        %v532 = vld [vmem:[#allocation7 + $0x20] sm:$0xff]
        %v533 = vld [vmem:[#allocation7 + $0x28] sm:$0xff]
        %v534 = vld [vmem:[#allocation7 + $0x30] sm:$0xff]
        %v535 = vld [vmem:[#allocation7 + $0x38] sm:$0xff]
        %v536 = vld [vmem:[#allocation7 + $0x40] sm:$0xff]
        %v537 = vld [vmem:[#allocation7 + $0x48] sm:$0xff]
        %v538 = vld [vmem:[#allocation7 + $0x50] sm:$0xff]
        %v539 = vld [vmem:[#allocation7 + $0x58] sm:$0xff]
        %v540 = vld [vmem:[#allocation7 + $0x60] sm:$0xff]
        %v541 = vld [vmem:[#allocation7 + $0x68] sm:$0xff]
        %v542 = vld [vmem:[#allocation7 + $0x70] sm:$0xff]
        %v543 = vld [vmem:[#allocation7 + $0x78] sm:$0xff]
        %v544 = vld [vmem:[#allocation7 + $0x80] sm:$0xff]
        %v545 = vld [vmem:[#allocation7 + $0x88] sm:$0xff]
        %v546 = vld [vmem:[#allocation7 + $0x90] sm:$0xff]
        %v547 = vld [vmem:[#allocation7 + $0x98] sm:$0xff]
        %v548 = vld [vmem:[#allocation7 + $0xa0] sm:$0xff]
        %v549 = vld [vmem:[#allocation7 + $0xa8] sm:$0xff]
        %v550 = vld [vmem:[#allocation7 + $0xb0] sm:$0xff]
        %v551 = vld [vmem:[#allocation7 + $0xb8] sm:$0xff]
        %v552 = vld [vmem:[#allocation7 + $0xc0] sm:$0xff]
        %v553 = vld [vmem:[#allocation7 + $0xc8] sm:$0xff]
        %v554 = vld [vmem:[#allocation7 + $0xd0] sm:$0xff]
        %v555 = vld [vmem:[#allocation7 + $0xd8] sm:$0xff]
        %v556 = vld [vmem:[#allocation7 + $0xe0] sm:$0xff]
        %v557 = vld [vmem:[#allocation7 + $0xe8] sm:$0xff]
        %v558 = vld [vmem:[#allocation7 + $0xf0] sm:$0xff]
        %v559 = vld [vmem:[#allocation7 + $0xf8] sm:$0xff]
        %v592 = vunpack.c.l.b16 %v528
        %v593 = vunpack.c.h.b16 %v528
        %v594 = vunpack.c.l.b16 %v529
        %v595 = vunpack.c.h.b16 %v529
        %v596 = vunpack.c.l.b16 %v530
        %v597 = vunpack.c.h.b16 %v530
        %v598 = vunpack.c.l.b16 %v531
        %v599 = vunpack.c.h.b16 %v531
        %v600 = vunpack.c.l.b16 %v532
        %v601 = vunpack.c.h.b16 %v532
        %v602 = vunpack.c.l.b16 %v533
        %v603 = vunpack.c.h.b16 %v533
        %v604 = vunpack.c.l.b16 %v534
        %v605 = vunpack.c.h.b16 %v534
        %v606 = vunpack.c.l.b16 %v535
        %v607 = vunpack.c.h.b16 %v535
        %v608 = vunpack.c.l.b16 %v536
        %v609 = vunpack.c.h.b16 %v536
        %v610 = vunpack.c.l.b16 %v537
        %v611 = vunpack.c.h.b16 %v537
        %v612 = vunpack.c.l.b16 %v538
        %v613 = vunpack.c.h.b16 %v538
        %v614 = vunpack.c.l.b16 %v539
        %v615 = vunpack.c.h.b16 %v539
        %v616 = vunpack.c.l.b16 %v540
        %v617 = vunpack.c.h.b16 %v540
        %v618 = vunpack.c.l.b16 %v541
        %v619 = vunpack.c.h.b16 %v541
        %v620 = vunpack.c.l.b16 %v542
        %v621 = vunpack.c.h.b16 %v542
        %v622 = vunpack.c.l.b16 %v543
        %v623 = vunpack.c.h.b16 %v543
        %v624 = vunpack.c.l.b16 %v544
        %v625 = vunpack.c.h.b16 %v544
        %v626 = vunpack.c.l.b16 %v545
        %v627 = vunpack.c.h.b16 %v545
        %v628 = vunpack.c.l.b16 %v546
        %v629 = vunpack.c.h.b16 %v546
        %v630 = vunpack.c.l.b16 %v547
        %v631 = vunpack.c.h.b16 %v547
        %v632 = vunpack.c.l.b16 %v548
        %v633 = vunpack.c.h.b16 %v548
        %v634 = vunpack.c.l.b16 %v549
        %v635 = vunpack.c.h.b16 %v549
        %v636 = vunpack.c.l.b16 %v550
        %v637 = vunpack.c.h.b16 %v550
        %v638 = vunpack.c.l.b16 %v551
        %v639 = vunpack.c.h.b16 %v551
        %v640 = vunpack.c.l.b16 %v552
        %v641 = vunpack.c.h.b16 %v552
        %v642 = vunpack.c.l.b16 %v553
        %v643 = vunpack.c.h.b16 %v553
        %v644 = vunpack.c.l.b16 %v554
        %v645 = vunpack.c.h.b16 %v554
        %v646 = vunpack.c.l.b16 %v555
        %v647 = vunpack.c.h.b16 %v555
        %v648 = vunpack.c.l.b16 %v556
        %v649 = vunpack.c.h.b16 %v556
        %v650 = vunpack.c.l.b16 %v557
        %v651 = vunpack.c.h.b16 %v557
        %v652 = vunpack.c.l.b16 %v558
        %v653 = vunpack.c.h.b16 %v558
        %v654 = vunpack.c.l.b16 %v559
        %v655 = vunpack.c.h.b16 %v559
        %v656 = vpack.c.b16 %v596, %v592
        %v657 = vpack.c.b16 %v597, %v593
        %v658 = vpack.c.b16 %v598, %v594
        %v659 = vpack.c.b16 %v599, %v595
        %v660 = vpack.c.b16 %v604, %v600
        %v661 = vpack.c.b16 %v605, %v601
        %v662 = vpack.c.b16 %v606, %v602
        %v663 = vpack.c.b16 %v607, %v603
        %v664 = vpack.c.b16 %v612, %v608
        %v665 = vpack.c.b16 %v613, %v609
        %v666 = vpack.c.b16 %v614, %v610
        %v667 = vpack.c.b16 %v615, %v611
        %v668 = vpack.c.b16 %v620, %v616
        %v669 = vpack.c.b16 %v621, %v617
        %v670 = vpack.c.b16 %v622, %v618
        %v671 = vpack.c.b16 %v623, %v619
        %v672 = vpack.c.b16 %v628, %v624
        %v673 = vpack.c.b16 %v629, %v625
        %v674 = vpack.c.b16 %v630, %v626
        %v675 = vpack.c.b16 %v631, %v627
        %v676 = vpack.c.b16 %v636, %v632
        %v677 = vpack.c.b16 %v637, %v633
        %v678 = vpack.c.b16 %v638, %v634
        %v679 = vpack.c.b16 %v639, %v635
        %v680 = vpack.c.b16 %v644, %v640
        %v681 = vpack.c.b16 %v645, %v641
        %v682 = vpack.c.b16 %v646, %v642
        %v683 = vpack.c.b16 %v647, %v643
        %v684 = vpack.c.b16 %v652, %v648
        %v685 = vpack.c.b16 %v653, %v649
        %v686 = vpack.c.b16 %v654, %v650
        %v687 = vpack.c.b16 %v655, %v651
        %720 = vmatprep.subr.bf16.mxu0 %v657
        %721 = vmatpush1.bf16.msra.mxu0 %v656
        %722 = vmatprep.subr.bf16.mxu0 %v661
        %723 = vmatpush1.bf16.msra.mxu0 %v660
        %724 = vmatprep.subr.bf16.mxu0 %v665
        %725 = vmatpush1.bf16.msra.mxu0 %v664
        %726 = vmatprep.subr.bf16.mxu0 %v669
        %727 = vmatpush1.bf16.msra.mxu0 %v668
        %728 = vmatprep.subr.bf16.mxu0 %v673
        %729 = vmatpush1.bf16.msra.mxu0 %v672
        %730 = vmatprep.subr.bf16.mxu0 %v677
        %731 = vmatpush1.bf16.msra.mxu0 %v676
        %732 = vmatprep.subr.bf16.mxu0 %v681
        %733 = vmatpush1.bf16.msra.mxu0 %v680
        %734 = vmatprep.subr.bf16.mxu0 %v685
        %735 = vmatpush1.bf16.msra.mxu0 %v684
        %736 = vmatprep.subr.bf16.mxu0 0
        %737 = vmatpush1.bf16.msra.mxu0 0
        %738 = vmatprep.subr.bf16.mxu0 0
        %739 = vmatpush1.bf16.msra.mxu0 0
        %740 = vmatprep.subr.bf16.mxu0 0
        %741 = vmatpush1.bf16.msra.mxu0 0
        %742 = vmatprep.subr.bf16.mxu0 0
        %743 = vmatpush1.bf16.msra.mxu0 0
        %744 = vmatprep.subr.bf16.mxu0 0
        %745 = vmatpush1.bf16.msra.mxu0 0
        %746 = vmatprep.subr.bf16.mxu0 0
        %747 = vmatpush1.bf16.msra.mxu0 0
        %748 = vmatprep.subr.bf16.mxu0 0
        %749 = vmatpush1.bf16.msra.mxu0 0
        %750 = vmatprep.subr.bf16.mxu0 0
        %751 = vmatpush1.bf16.msra.mxu0 0
        %752 = vmatprep.mubr.bf16.mxu0 0
        %753 = vmatmul.mubr.bf16.gmra.mrb[0].mxu0 %v527
        %v754 = vpop.f32.mrb[0].mxu0
        %v755 = vadd.f32 0.0, %v754
        %v756 = vpop.f32.mrb[0].mxu0
        %v757 = vadd.f32 0.0, %v756
        %v758 = vpop.f32.mrb[0].mxu0
        %v759 = vpop.f32.mrb[0].mxu0
        %760 = vdwg.mxu0
        %761 = vmatprep.subr.bf16.mxu0 %v659
        %762 = vmatpush1.bf16.msra.mxu0 %v658
        %763 = vmatprep.subr.bf16.mxu0 %v663
        %764 = vmatpush1.bf16.msra.mxu0 %v662
        %765 = vmatprep.subr.bf16.mxu0 %v667
        %766 = vmatpush1.bf16.msra.mxu0 %v666
        %767 = vmatprep.subr.bf16.mxu0 %v671
        %768 = vmatpush1.bf16.msra.mxu0 %v670
        %769 = vmatprep.subr.bf16.mxu0 %v675
        %770 = vmatpush1.bf16.msra.mxu0 %v674
        %771 = vmatprep.subr.bf16.mxu0 %v679
        %772 = vmatpush1.bf16.msra.mxu0 %v678
        %773 = vmatprep.subr.bf16.mxu0 %v683
        %774 = vmatpush1.bf16.msra.mxu0 %v682
        %775 = vmatprep.subr.bf16.mxu0 %v687
        %776 = vmatpush1.bf16.msra.mxu0 %v686
        %777 = vmatprep.subr.bf16.mxu0 0
        %778 = vmatpush1.bf16.msra.mxu0 0
        %779 = vmatprep.subr.bf16.mxu0 0
        %780 = vmatpush1.bf16.msra.mxu0 0
        %781 = vmatprep.subr.bf16.mxu0 0
        %782 = vmatpush1.bf16.msra.mxu0 0
        %783 = vmatprep.subr.bf16.mxu0 0
        %784 = vmatpush1.bf16.msra.mxu0 0
        %785 = vmatprep.subr.bf16.mxu0 0
        %786 = vmatpush1.bf16.msra.mxu0 0
        %787 = vmatprep.subr.bf16.mxu0 0
        %788 = vmatpush1.bf16.msra.mxu0 0
        %789 = vmatprep.subr.bf16.mxu0 0
        %790 = vmatpush1.bf16.msra.mxu0 0
        %791 = vmatprep.subr.bf16.mxu0 0
        %792 = vmatpush1.bf16.msra.mxu0 0
        %793 = vmatprep.mubr.bf16.mxu0 0
        %794 = vmatmul.mubr.bf16.gmra.mrb[0].mxu0 %v527
        %v795 = vpop.f32.mrb[0].mxu0
        %v796 = vadd.f32 0.0, %v795
        %v797 = vpop.f32.mrb[0].mxu0
        %v798 = vadd.f32 0.0, %v797
        %v799 = vpop.f32.mrb[0].mxu0
        %v800 = vpop.f32.mrb[0].mxu0
        %801 = vdwg.mxu0
        %v802 = vadd.f32 %v522, %v755
        %v803 = vadd.f32 %v523, %v757
        %v804 = vadd.f32 %v524, %v796
        %v805 = vadd.f32 %v525, %v798
        %v806 = vxor.u32 %v802, 2147483648
        %v807 = vmul.f32 %v806, 1.442695
        %v808 = vpow.pop %v807
        %v809 = vadd.f32 %v808, 1.0
        %v810 = vrcp.pop %v809
        %v811 = vmul.f32 1.0, %v810
        %v812 = vxor.u32 %v803, 2147483648
        %v813 = vmul.f32 %v812, 1.442695
        %v814 = vpow.pop %v813
        %v815 = vadd.f32 %v814, 1.0
        %v816 = vrcp.pop %v815
        %v817 = vmul.f32 1.0, %v816
        %v818 = vtanh.pop %v804
        %v819 = vxor.u32 %v805, 2147483648
        %v820 = vmul.f32 %v819, 1.442695
        %v821 = vpow.pop %v820
        %v822 = vadd.f32 %v821, 1.0
        %v823 = vrcp.pop %v822
        %v824 = vmul.f32 1.0, %v823
        %v825 = vld [vmem:[#allocation3] sm:$0xff]
        %v826 = vmul.f32 %v817, %v825
        %v827 = vmul.f32 %v811, %v818
        %v828 = vadd.f32 %v826, %v827
        %v829 = vtanh.pop %v828
        %v830 = vmul.f32 %v824, %v829
        %831 = vst [vmem:[#allocation3] sm:$0xff] %v828
        %832 = vst [vmem:[#allocation2] sm:$0xff] %v830
        %s833 = scalar_lea.vmem %s195, 8 [#allocation9]
        %834 = vst [vmem:[%s833] sm:$0xff] %v830
        %s835 = scalar_lea.vmem %s171, 32 [#allocation4]
        %v836 = vld [vmem:[%s835] sm:$0xff]
        %v837 = vld [vmem:[%s835 + $0x8] sm:$0xff]
        %v838 = vunpack.c.l.bf16 %v836
        %v839 = vunpack.c.h.bf16 %v836
        %v840 = vunpack.c.l.bf16 %v837
        %v841 = vunpack.c.h.bf16 %v837
        %v842 = vld [vmem:[#allocation2] sm:$0xff]
        %v843 = vpack.c.bf16 %v842, %v842
        %v844 = vld [vmem:[#allocation7] sm:$0xff]
        %v845 = vld [vmem:[#allocation7 + $0x8] sm:$0xff]
        %v846 = vld [vmem:[#allocation7 + $0x10] sm:$0xff]
        %v847 = vld [vmem:[#allocation7 + $0x18] sm:$0xff]
        %v848 = vld [vmem:[#allocation7 + $0x20] sm:$0xff]
        %v849 = vld [vmem:[#allocation7 + $0x28] sm:$0xff]
        %v850 = vld [vmem:[#allocation7 + $0x30] sm:$0xff]
        %v851 = vld [vmem:[#allocation7 + $0x38] sm:$0xff]
        %v852 = vld [vmem:[#allocation7 + $0x40] sm:$0xff]
        %v853 = vld [vmem:[#allocation7 + $0x48] sm:$0xff]
        %v854 = vld [vmem:[#allocation7 + $0x50] sm:$0xff]
        %v855 = vld [vmem:[#allocation7 + $0x58] sm:$0xff]
        %v856 = vld [vmem:[#allocation7 + $0x60] sm:$0xff]
        %v857 = vld [vmem:[#allocation7 + $0x68] sm:$0xff]
        %v858 = vld [vmem:[#allocation7 + $0x70] sm:$0xff]
        %v859 = vld [vmem:[#allocation7 + $0x78] sm:$0xff]
        %v860 = vld [vmem:[#allocation7 + $0x80] sm:$0xff]
        %v861 = vld [vmem:[#allocation7 + $0x88] sm:$0xff]
        %v862 = vld [vmem:[#allocation7 + $0x90] sm:$0xff]
        %v863 = vld [vmem:[#allocation7 + $0x98] sm:$0xff]
        %v864 = vld [vmem:[#allocation7 + $0xa0] sm:$0xff]
        %v865 = vld [vmem:[#allocation7 + $0xa8] sm:$0xff]
        %v866 = vld [vmem:[#allocation7 + $0xb0] sm:$0xff]
        %v867 = vld [vmem:[#allocation7 + $0xb8] sm:$0xff]
        %v868 = vld [vmem:[#allocation7 + $0xc0] sm:$0xff]
        %v869 = vld [vmem:[#allocation7 + $0xc8] sm:$0xff]
        %v870 = vld [vmem:[#allocation7 + $0xd0] sm:$0xff]
        %v871 = vld [vmem:[#allocation7 + $0xd8] sm:$0xff]
        %v872 = vld [vmem:[#allocation7 + $0xe0] sm:$0xff]
        %v873 = vld [vmem:[#allocation7 + $0xe8] sm:$0xff]
        %v874 = vld [vmem:[#allocation7 + $0xf0] sm:$0xff]
        %v875 = vld [vmem:[#allocation7 + $0xf8] sm:$0xff]
        %v908 = vunpack.c.l.b16 %v844
        %v909 = vunpack.c.h.b16 %v844
        %v910 = vunpack.c.l.b16 %v845
        %v911 = vunpack.c.h.b16 %v845
        %v912 = vunpack.c.l.b16 %v846
        %v913 = vunpack.c.h.b16 %v846
        %v914 = vunpack.c.l.b16 %v847
        %v915 = vunpack.c.h.b16 %v847
        %v916 = vunpack.c.l.b16 %v848
        %v917 = vunpack.c.h.b16 %v848
        %v918 = vunpack.c.l.b16 %v849
        %v919 = vunpack.c.h.b16 %v849
        %v920 = vunpack.c.l.b16 %v850
        %v921 = vunpack.c.h.b16 %v850
        %v922 = vunpack.c.l.b16 %v851
        %v923 = vunpack.c.h.b16 %v851
        %v924 = vunpack.c.l.b16 %v852
        %v925 = vunpack.c.h.b16 %v852
        %v926 = vunpack.c.l.b16 %v853
        %v927 = vunpack.c.h.b16 %v853
        %v928 = vunpack.c.l.b16 %v854
        %v929 = vunpack.c.h.b16 %v854
        %v930 = vunpack.c.l.b16 %v855
        %v931 = vunpack.c.h.b16 %v855
        %v932 = vunpack.c.l.b16 %v856
        %v933 = vunpack.c.h.b16 %v856
        %v934 = vunpack.c.l.b16 %v857
        %v935 = vunpack.c.h.b16 %v857
        %v936 = vunpack.c.l.b16 %v858
        %v937 = vunpack.c.h.b16 %v858
        %v938 = vunpack.c.l.b16 %v859
        %v939 = vunpack.c.h.b16 %v859
        %v940 = vunpack.c.l.b16 %v860
        %v941 = vunpack.c.h.b16 %v860
        %v942 = vunpack.c.l.b16 %v861
        %v943 = vunpack.c.h.b16 %v861
        %v944 = vunpack.c.l.b16 %v862
        %v945 = vunpack.c.h.b16 %v862
        %v946 = vunpack.c.l.b16 %v863
        %v947 = vunpack.c.h.b16 %v863
        %v948 = vunpack.c.l.b16 %v864
        %v949 = vunpack.c.h.b16 %v864
        %v950 = vunpack.c.l.b16 %v865
        %v951 = vunpack.c.h.b16 %v865
        %v952 = vunpack.c.l.b16 %v866
        %v953 = vunpack.c.h.b16 %v866
        %v954 = vunpack.c.l.b16 %v867
        %v955 = vunpack.c.h.b16 %v867
        %v956 = vunpack.c.l.b16 %v868
        %v957 = vunpack.c.h.b16 %v868
        %v958 = vunpack.c.l.b16 %v869
        %v959 = vunpack.c.h.b16 %v869
        %v960 = vunpack.c.l.b16 %v870
        %v961 = vunpack.c.h.b16 %v870
        %v962 = vunpack.c.l.b16 %v871
        %v963 = vunpack.c.h.b16 %v871
        %v964 = vunpack.c.l.b16 %v872
        %v965 = vunpack.c.h.b16 %v872
        %v966 = vunpack.c.l.b16 %v873
        %v967 = vunpack.c.h.b16 %v873
        %v968 = vunpack.c.l.b16 %v874
        %v969 = vunpack.c.h.b16 %v874
        %v970 = vunpack.c.l.b16 %v875
        %v971 = vunpack.c.h.b16 %v875
        %v972 = vpack.c.b16 %v912, %v908
        %v973 = vpack.c.b16 %v913, %v909
        %v974 = vpack.c.b16 %v914, %v910
        %v975 = vpack.c.b16 %v915, %v911
        %v976 = vpack.c.b16 %v920, %v916
        %v977 = vpack.c.b16 %v921, %v917
        %v978 = vpack.c.b16 %v922, %v918
        %v979 = vpack.c.b16 %v923, %v919
        %v980 = vpack.c.b16 %v928, %v924
        %v981 = vpack.c.b16 %v929, %v925
        %v982 = vpack.c.b16 %v930, %v926
        %v983 = vpack.c.b16 %v931, %v927
        %v984 = vpack.c.b16 %v936, %v932
        %v985 = vpack.c.b16 %v937, %v933
        %v986 = vpack.c.b16 %v938, %v934
        %v987 = vpack.c.b16 %v939, %v935
        %v988 = vpack.c.b16 %v944, %v940
        %v989 = vpack.c.b16 %v945, %v941
        %v990 = vpack.c.b16 %v946, %v942
        %v991 = vpack.c.b16 %v947, %v943
        %v992 = vpack.c.b16 %v952, %v948
        %v993 = vpack.c.b16 %v953, %v949
        %v994 = vpack.c.b16 %v954, %v950
        %v995 = vpack.c.b16 %v955, %v951
        %v996 = vpack.c.b16 %v960, %v956
        %v997 = vpack.c.b16 %v961, %v957
        %v998 = vpack.c.b16 %v962, %v958
        %v999 = vpack.c.b16 %v963, %v959
        %v1000 = vpack.c.b16 %v968, %v964
        %v1001 = vpack.c.b16 %v969, %v965
        %v1002 = vpack.c.b16 %v970, %v966
        %v1003 = vpack.c.b16 %v971, %v967
        %1036 = vmatprep.subr.bf16.mxu0 %v973
        %1037 = vmatpush1.bf16.msra.mxu0 %v972
        %1038 = vmatprep.subr.bf16.mxu0 %v977
        %1039 = vmatpush1.bf16.msra.mxu0 %v976
        %1040 = vmatprep.subr.bf16.mxu0 %v981
        %1041 = vmatpush1.bf16.msra.mxu0 %v980
        %1042 = vmatprep.subr.bf16.mxu0 %v985
        %1043 = vmatpush1.bf16.msra.mxu0 %v984
        %1044 = vmatprep.subr.bf16.mxu0 %v989
        %1045 = vmatpush1.bf16.msra.mxu0 %v988
        %1046 = vmatprep.subr.bf16.mxu0 %v993
        %1047 = vmatpush1.bf16.msra.mxu0 %v992
        %1048 = vmatprep.subr.bf16.mxu0 %v997
        %1049 = vmatpush1.bf16.msra.mxu0 %v996
        %1050 = vmatprep.subr.bf16.mxu0 %v1001
        %1051 = vmatpush1.bf16.msra.mxu0 %v1000
        %1052 = vmatprep.subr.bf16.mxu0 0
        %1053 = vmatpush1.bf16.msra.mxu0 0
        %1054 = vmatprep.subr.bf16.mxu0 0
        %1055 = vmatpush1.bf16.msra.mxu0 0
        %1056 = vmatprep.subr.bf16.mxu0 0
        %1057 = vmatpush1.bf16.msra.mxu0 0
        %1058 = vmatprep.subr.bf16.mxu0 0
        %1059 = vmatpush1.bf16.msra.mxu0 0
        %1060 = vmatprep.subr.bf16.mxu0 0
        %1061 = vmatpush1.bf16.msra.mxu0 0
        %1062 = vmatprep.subr.bf16.mxu0 0
        %1063 = vmatpush1.bf16.msra.mxu0 0
        %1064 = vmatprep.subr.bf16.mxu0 0
        %1065 = vmatpush1.bf16.msra.mxu0 0
        %1066 = vmatprep.subr.bf16.mxu0 0
        %1067 = vmatpush1.bf16.msra.mxu0 0
        %1068 = vmatprep.mubr.bf16.mxu0 0
        %1069 = vmatmul.mubr.bf16.gmra.mrb[0].mxu0 %v843
        %v1070 = vpop.f32.mrb[0].mxu0
        %v1071 = vadd.f32 0.0, %v1070
        %v1072 = vpop.f32.mrb[0].mxu0
        %v1073 = vadd.f32 0.0, %v1072
        %v1074 = vpop.f32.mrb[0].mxu0
        %v1075 = vpop.f32.mrb[0].mxu0
        %1076 = vdwg.mxu0
        %1077 = vmatprep.subr.bf16.mxu0 %v975
        %1078 = vmatpush1.bf16.msra.mxu0 %v974
        %1079 = vmatprep.subr.bf16.mxu0 %v979
        %1080 = vmatpush1.bf16.msra.mxu0 %v978
        %1081 = vmatprep.subr.bf16.mxu0 %v983
        %1082 = vmatpush1.bf16.msra.mxu0 %v982
        %1083 = vmatprep.subr.bf16.mxu0 %v987
        %1084 = vmatpush1.bf16.msra.mxu0 %v986
        %1085 = vmatprep.subr.bf16.mxu0 %v991
        %1086 = vmatpush1.bf16.msra.mxu0 %v990
        %1087 = vmatprep.subr.bf16.mxu0 %v995
        %1088 = vmatpush1.bf16.msra.mxu0 %v994
        %1089 = vmatprep.subr.bf16.mxu0 %v999
        %1090 = vmatpush1.bf16.msra.mxu0 %v998
        %1091 = vmatprep.subr.bf16.mxu0 %v1003
        %1092 = vmatpush1.bf16.msra.mxu0 %v1002
        %1093 = vmatprep.subr.bf16.mxu0 0
        %1094 = vmatpush1.bf16.msra.mxu0 0
        %1095 = vmatprep.subr.bf16.mxu0 0
        %1096 = vmatpush1.bf16.msra.mxu0 0
        %1097 = vmatprep.subr.bf16.mxu0 0
        %1098 = vmatpush1.bf16.msra.mxu0 0
        %1099 = vmatprep.subr.bf16.mxu0 0
        %1100 = vmatpush1.bf16.msra.mxu0 0
        %1101 = vmatprep.subr.bf16.mxu0 0
        %1102 = vmatpush1.bf16.msra.mxu0 0
        %1103 = vmatprep.subr.bf16.mxu0 0
        %1104 = vmatpush1.bf16.msra.mxu0 0
        %1105 = vmatprep.subr.bf16.mxu0 0
        %1106 = vmatpush1.bf16.msra.mxu0 0
        %1107 = vmatprep.subr.bf16.mxu0 0
        %1108 = vmatpush1.bf16.msra.mxu0 0
        %1109 = vmatprep.mubr.bf16.mxu0 0
        %1110 = vmatmul.mubr.bf16.gmra.mrb[0].mxu0 %v843
        %v1111 = vpop.f32.mrb[0].mxu0
        %v1112 = vadd.f32 0.0, %v1111
        %v1113 = vpop.f32.mrb[0].mxu0
        %v1114 = vadd.f32 0.0, %v1113
        %v1115 = vpop.f32.mrb[0].mxu0
        %v1116 = vpop.f32.mrb[0].mxu0
        %1117 = vdwg.mxu0
        %v1118 = vadd.f32 %v838, %v1071
        %v1119 = vadd.f32 %v839, %v1073
        %v1120 = vadd.f32 %v840, %v1112
        %v1121 = vadd.f32 %v841, %v1114
        %v1122 = vxor.u32 %v1118, 2147483648
        %v1123 = vmul.f32 %v1122, 1.442695
        %v1124 = vpow.pop %v1123
        %v1125 = vadd.f32 %v1124, 1.0
        %v1126 = vrcp.pop %v1125
        %v1127 = vmul.f32 1.0, %v1126
        %v1128 = vxor.u32 %v1119, 2147483648
        %v1129 = vmul.f32 %v1128, 1.442695
        %v1130 = vpow.pop %v1129
        %v1131 = vadd.f32 %v1130, 1.0
        %v1132 = vrcp.pop %v1131
        %v1133 = vmul.f32 1.0, %v1132
        %v1134 = vtanh.pop %v1120
        %v1135 = vxor.u32 %v1121, 2147483648
        %v1136 = vmul.f32 %v1135, 1.442695
        %v1137 = vpow.pop %v1136
        %v1138 = vadd.f32 %v1137, 1.0
        %v1139 = vrcp.pop %v1138
        %v1140 = vmul.f32 1.0, %v1139
        %v1141 = vld [vmem:[#allocation3] sm:$0xff]
        %v1142 = vmul.f32 %v1133, %v1141
        %v1143 = vmul.f32 %v1127, %v1134
        %v1144 = vadd.f32 %v1142, %v1143
        %v1145 = vtanh.pop %v1144
        %v1146 = vmul.f32 %v1140, %v1145
        %1147 = vst [vmem:[#allocation3] sm:$0xff] %v1144
        %1148 = vst [vmem:[#allocation2] sm:$0xff] %v1146
        %s1149 = scalar_lea.vmem %s195, 16 [#allocation9]
        %1150 = vst [vmem:[%s1149] sm:$0xff] %v1146
        %s1151 = scalar_lea.vmem %s171, 48 [#allocation4]
        %v1152 = vld [vmem:[%s1151] sm:$0xff]
        %v1153 = vld [vmem:[%s1151 + $0x8] sm:$0xff]
        %v1154 = vunpack.c.l.bf16 %v1152
        %v1155 = vunpack.c.h.bf16 %v1152
        %v1156 = vunpack.c.l.bf16 %v1153
        %v1157 = vunpack.c.h.bf16 %v1153
        %v1158 = vld [vmem:[#allocation2] sm:$0xff]
        %v1159 = vpack.c.bf16 %v1158, %v1158
        %v1160 = vld [vmem:[#allocation7] sm:$0xff]
        %v1161 = vld [vmem:[#allocation7 + $0x8] sm:$0xff]
        %v1162 = vld [vmem:[#allocation7 + $0x10] sm:$0xff]
        %v1163 = vld [vmem:[#allocation7 + $0x18] sm:$0xff]
        %v1164 = vld [vmem:[#allocation7 + $0x20] sm:$0xff]
        %v1165 = vld [vmem:[#allocation7 + $0x28] sm:$0xff]
        %v1166 = vld [vmem:[#allocation7 + $0x30] sm:$0xff]
        %v1167 = vld [vmem:[#allocation7 + $0x38] sm:$0xff]
        %v1168 = vld [vmem:[#allocation7 + $0x40] sm:$0xff]
        %v1169 = vld [vmem:[#allocation7 + $0x48] sm:$0xff]
        %v1170 = vld [vmem:[#allocation7 + $0x50] sm:$0xff]
        %v1171 = vld [vmem:[#allocation7 + $0x58] sm:$0xff]
        %v1172 = vld [vmem:[#allocation7 + $0x60] sm:$0xff]
        %v1173 = vld [vmem:[#allocation7 + $0x68] sm:$0xff]
        %v1174 = vld [vmem:[#allocation7 + $0x70] sm:$0xff]
        %v1175 = vld [vmem:[#allocation7 + $0x78] sm:$0xff]
        %v1176 = vld [vmem:[#allocation7 + $0x80] sm:$0xff]
        %v1177 = vld [vmem:[#allocation7 + $0x88] sm:$0xff]
        %v1178 = vld [vmem:[#allocation7 + $0x90] sm:$0xff]
        %v1179 = vld [vmem:[#allocation7 + $0x98] sm:$0xff]
        %v1180 = vld [vmem:[#allocation7 + $0xa0] sm:$0xff]
        %v1181 = vld [vmem:[#allocation7 + $0xa8] sm:$0xff]
        %v1182 = vld [vmem:[#allocation7 + $0xb0] sm:$0xff]
        %v1183 = vld [vmem:[#allocation7 + $0xb8] sm:$0xff]
        %v1184 = vld [vmem:[#allocation7 + $0xc0] sm:$0xff]
        %v1185 = vld [vmem:[#allocation7 + $0xc8] sm:$0xff]
        %v1186 = vld [vmem:[#allocation7 + $0xd0] sm:$0xff]
        %v1187 = vld [vmem:[#allocation7 + $0xd8] sm:$0xff]
        %v1188 = vld [vmem:[#allocation7 + $0xe0] sm:$0xff]
        %v1189 = vld [vmem:[#allocation7 + $0xe8] sm:$0xff]
        %v1190 = vld [vmem:[#allocation7 + $0xf0] sm:$0xff]
        %v1191 = vld [vmem:[#allocation7 + $0xf8] sm:$0xff]
        %v1224 = vunpack.c.l.b16 %v1160
        %v1225 = vunpack.c.h.b16 %v1160
        %v1226 = vunpack.c.l.b16 %v1161
        %v1227 = vunpack.c.h.b16 %v1161
        %v1228 = vunpack.c.l.b16 %v1162
        %v1229 = vunpack.c.h.b16 %v1162
        %v1230 = vunpack.c.l.b16 %v1163
        %v1231 = vunpack.c.h.b16 %v1163
        %v1232 = vunpack.c.l.b16 %v1164
        %v1233 = vunpack.c.h.b16 %v1164
        %v1234 = vunpack.c.l.b16 %v1165
        %v1235 = vunpack.c.h.b16 %v1165
        %v1236 = vunpack.c.l.b16 %v1166
        %v1237 = vunpack.c.h.b16 %v1166
        %v1238 = vunpack.c.l.b16 %v1167
        %v1239 = vunpack.c.h.b16 %v1167
        %v1240 = vunpack.c.l.b16 %v1168
        %v1241 = vunpack.c.h.b16 %v1168
        %v1242 = vunpack.c.l.b16 %v1169
        %v1243 = vunpack.c.h.b16 %v1169
        %v1244 = vunpack.c.l.b16 %v1170
        %v1245 = vunpack.c.h.b16 %v1170
        %v1246 = vunpack.c.l.b16 %v1171
        %v1247 = vunpack.c.h.b16 %v1171
        %v1248 = vunpack.c.l.b16 %v1172
        %v1249 = vunpack.c.h.b16 %v1172
        %v1250 = vunpack.c.l.b16 %v1173
        %v1251 = vunpack.c.h.b16 %v1173
        %v1252 = vunpack.c.l.b16 %v1174
        %v1253 = vunpack.c.h.b16 %v1174
        %v1254 = vunpack.c.l.b16 %v1175
        %v1255 = vunpack.c.h.b16 %v1175
        %v1256 = vunpack.c.l.b16 %v1176
        %v1257 = vunpack.c.h.b16 %v1176
        %v1258 = vunpack.c.l.b16 %v1177
        %v1259 = vunpack.c.h.b16 %v1177
        %v1260 = vunpack.c.l.b16 %v1178
        %v1261 = vunpack.c.h.b16 %v1178
        %v1262 = vunpack.c.l.b16 %v1179
        %v1263 = vunpack.c.h.b16 %v1179
        %v1264 = vunpack.c.l.b16 %v1180
        %v1265 = vunpack.c.h.b16 %v1180
        %v1266 = vunpack.c.l.b16 %v1181
        %v1267 = vunpack.c.h.b16 %v1181
        %v1268 = vunpack.c.l.b16 %v1182
        %v1269 = vunpack.c.h.b16 %v1182
        %v1270 = vunpack.c.l.b16 %v1183
        %v1271 = vunpack.c.h.b16 %v1183
        %v1272 = vunpack.c.l.b16 %v1184
        %v1273 = vunpack.c.h.b16 %v1184
        %v1274 = vunpack.c.l.b16 %v1185
        %v1275 = vunpack.c.h.b16 %v1185
        %v1276 = vunpack.c.l.b16 %v1186
        %v1277 = vunpack.c.h.b16 %v1186
        %v1278 = vunpack.c.l.b16 %v1187
        %v1279 = vunpack.c.h.b16 %v1187
        %v1280 = vunpack.c.l.b16 %v1188
        %v1281 = vunpack.c.h.b16 %v1188
        %v1282 = vunpack.c.l.b16 %v1189
        %v1283 = vunpack.c.h.b16 %v1189
        %v1284 = vunpack.c.l.b16 %v1190
        %v1285 = vunpack.c.h.b16 %v1190
        %v1286 = vunpack.c.l.b16 %v1191
        %v1287 = vunpack.c.h.b16 %v1191
        %v1288 = vpack.c.b16 %v1228, %v1224
        %v1289 = vpack.c.b16 %v1229, %v1225
        %v1290 = vpack.c.b16 %v1230, %v1226
        %v1291 = vpack.c.b16 %v1231, %v1227
        %v1292 = vpack.c.b16 %v1236, %v1232
        %v1293 = vpack.c.b16 %v1237, %v1233
        %v1294 = vpack.c.b16 %v1238, %v1234
        %v1295 = vpack.c.b16 %v1239, %v1235
        %v1296 = vpack.c.b16 %v1244, %v1240
        %v1297 = vpack.c.b16 %v1245, %v1241
        %v1298 = vpack.c.b16 %v1246, %v1242
        %v1299 = vpack.c.b16 %v1247, %v1243
        %v1300 = vpack.c.b16 %v1252, %v1248
        %v1301 = vpack.c.b16 %v1253, %v1249
        %v1302 = vpack.c.b16 %v1254, %v1250
        %v1303 = vpack.c.b16 %v1255, %v1251
        %v1304 = vpack.c.b16 %v1260, %v1256
        %v1305 = vpack.c.b16 %v1261, %v1257
        %v1306 = vpack.c.b16 %v1262, %v1258
        %v1307 = vpack.c.b16 %v1263, %v1259
        %v1308 = vpack.c.b16 %v1268, %v1264
        %v1309 = vpack.c.b16 %v1269, %v1265
        %v1310 = vpack.c.b16 %v1270, %v1266
        %v1311 = vpack.c.b16 %v1271, %v1267
        %v1312 = vpack.c.b16 %v1276, %v1272
        %v1313 = vpack.c.b16 %v1277, %v1273
        %v1314 = vpack.c.b16 %v1278, %v1274
        %v1315 = vpack.c.b16 %v1279, %v1275
        %v1316 = vpack.c.b16 %v1284, %v1280
        %v1317 = vpack.c.b16 %v1285, %v1281
        %v1318 = vpack.c.b16 %v1286, %v1282
        %v1319 = vpack.c.b16 %v1287, %v1283
        %1352 = vmatprep.subr.bf16.mxu0 %v1289
        %1353 = vmatpush1.bf16.msra.mxu0 %v1288
        %1354 = vmatprep.subr.bf16.mxu0 %v1293
        %1355 = vmatpush1.bf16.msra.mxu0 %v1292
        %1356 = vmatprep.subr.bf16.mxu0 %v1297
        %1357 = vmatpush1.bf16.msra.mxu0 %v1296
        %1358 = vmatprep.subr.bf16.mxu0 %v1301
        %1359 = vmatpush1.bf16.msra.mxu0 %v1300
        %1360 = vmatprep.subr.bf16.mxu0 %v1305
        %1361 = vmatpush1.bf16.msra.mxu0 %v1304
        %1362 = vmatprep.subr.bf16.mxu0 %v1309
        %1363 = vmatpush1.bf16.msra.mxu0 %v1308
        %1364 = vmatprep.subr.bf16.mxu0 %v1313
        %1365 = vmatpush1.bf16.msra.mxu0 %v1312
        %1366 = vmatprep.subr.bf16.mxu0 %v1317
        %1367 = vmatpush1.bf16.msra.mxu0 %v1316
        %1368 = vmatprep.subr.bf16.mxu0 0
        %1369 = vmatpush1.bf16.msra.mxu0 0
        %1370 = vmatprep.subr.bf16.mxu0 0
        %1371 = vmatpush1.bf16.msra.mxu0 0
        %1372 = vmatprep.subr.bf16.mxu0 0
        %1373 = vmatpush1.bf16.msra.mxu0 0
        %1374 = vmatprep.subr.bf16.mxu0 0
        %1375 = vmatpush1.bf16.msra.mxu0 0
        %1376 = vmatprep.subr.bf16.mxu0 0
        %1377 = vmatpush1.bf16.msra.mxu0 0
        %1378 = vmatprep.subr.bf16.mxu0 0
        %1379 = vmatpush1.bf16.msra.mxu0 0
        %1380 = vmatprep.subr.bf16.mxu0 0
        %1381 = vmatpush1.bf16.msra.mxu0 0
        %1382 = vmatprep.subr.bf16.mxu0 0
        %1383 = vmatpush1.bf16.msra.mxu0 0
        %1384 = vmatprep.mubr.bf16.mxu0 0
        %1385 = vmatmul.mubr.bf16.gmra.mrb[0].mxu0 %v1159
        %v1386 = vpop.f32.mrb[0].mxu0
        %v1387 = vadd.f32 0.0, %v1386
        %v1388 = vpop.f32.mrb[0].mxu0
        %v1389 = vadd.f32 0.0, %v1388
        %v1390 = vpop.f32.mrb[0].mxu0
        %v1391 = vpop.f32.mrb[0].mxu0
        %1392 = vdwg.mxu0
        %1393 = vmatprep.subr.bf16.mxu0 %v1291
        %1394 = vmatpush1.bf16.msra.mxu0 %v1290
        %1395 = vmatprep.subr.bf16.mxu0 %v1295
        %1396 = vmatpush1.bf16.msra.mxu0 %v1294
        %1397 = vmatprep.subr.bf16.mxu0 %v1299
        %1398 = vmatpush1.bf16.msra.mxu0 %v1298
        %1399 = vmatprep.subr.bf16.mxu0 %v1303
        %1400 = vmatpush1.bf16.msra.mxu0 %v1302
        %1401 = vmatprep.subr.bf16.mxu0 %v1307
        %1402 = vmatpush1.bf16.msra.mxu0 %v1306
        %1403 = vmatprep.subr.bf16.mxu0 %v1311
        %1404 = vmatpush1.bf16.msra.mxu0 %v1310
        %1405 = vmatprep.subr.bf16.mxu0 %v1315
        %1406 = vmatpush1.bf16.msra.mxu0 %v1314
        %1407 = vmatprep.subr.bf16.mxu0 %v1319
        %1408 = vmatpush1.bf16.msra.mxu0 %v1318
        %1409 = vmatprep.subr.bf16.mxu0 0
        %1410 = vmatpush1.bf16.msra.mxu0 0
        %1411 = vmatprep.subr.bf16.mxu0 0
        %1412 = vmatpush1.bf16.msra.mxu0 0
        %1413 = vmatprep.subr.bf16.mxu0 0
        %1414 = vmatpush1.bf16.msra.mxu0 0
        %1415 = vmatprep.subr.bf16.mxu0 0
        %1416 = vmatpush1.bf16.msra.mxu0 0
        %1417 = vmatprep.subr.bf16.mxu0 0
        %1418 = vmatpush1.bf16.msra.mxu0 0
        %1419 = vmatprep.subr.bf16.mxu0 0
        %1420 = vmatpush1.bf16.msra.mxu0 0
        %1421 = vmatprep.subr.bf16.mxu0 0
        %1422 = vmatpush1.bf16.msra.mxu0 0
        %1423 = vmatprep.subr.bf16.mxu0 0
        %1424 = vmatpush1.bf16.msra.mxu0 0
        %1425 = vmatprep.mubr.bf16.mxu0 0
        %1426 = vmatmul.mubr.bf16.gmra.mrb[0].mxu0 %v1159
        %v1427 = vpop.f32.mrb[0].mxu0
        %v1428 = vadd.f32 0.0, %v1427
        %v1429 = vpop.f32.mrb[0].mxu0
        %v1430 = vadd.f32 0.0, %v1429
        %v1431 = vpop.f32.mrb[0].mxu0
        %v1432 = vpop.f32.mrb[0].mxu0
        %1433 = vdwg.mxu0
        %v1434 = vadd.f32 %v1154, %v1387
        %v1435 = vadd.f32 %v1155, %v1389
        %v1436 = vadd.f32 %v1156, %v1428
        %v1437 = vadd.f32 %v1157, %v1430
        %v1438 = vxor.u32 %v1434, 2147483648
        %v1439 = vmul.f32 %v1438, 1.442695
        %v1440 = vpow.pop %v1439
        %v1441 = vadd.f32 %v1440, 1.0
        %v1442 = vrcp.pop %v1441
        %v1443 = vmul.f32 1.0, %v1442
        %v1444 = vxor.u32 %v1435, 2147483648
        %v1445 = vmul.f32 %v1444, 1.442695
        %v1446 = vpow.pop %v1445
        %v1447 = vadd.f32 %v1446, 1.0
        %v1448 = vrcp.pop %v1447
        %v1449 = vmul.f32 1.0, %v1448
        %v1450 = vtanh.pop %v1436
        %v1451 = vxor.u32 %v1437, 2147483648
        %v1452 = vmul.f32 %v1451, 1.442695
        %v1453 = vpow.pop %v1452
        %v1454 = vadd.f32 %v1453, 1.0
        %v1455 = vrcp.pop %v1454
        %v1456 = vmul.f32 1.0, %v1455
        %v1457 = vld [vmem:[#allocation3] sm:$0xff]
        %v1458 = vmul.f32 %v1449, %v1457
        %v1459 = vmul.f32 %v1443, %v1450
        %v1460 = vadd.f32 %v1458, %v1459
        %v1461 = vtanh.pop %v1460
        %v1462 = vmul.f32 %v1456, %v1461
        %1463 = vst [vmem:[#allocation3] sm:$0xff] %v1460
        %1464 = vst [vmem:[#allocation2] sm:$0xff] %v1462
        %s1465 = scalar_lea.vmem %s195, 24 [#allocation9]
        %1466 = vst [vmem:[%s1465] sm:$0xff] %v1462
        %s1467 = sand.u32 %s91, 1
        %s1468 = scalar_lea.sflag [#allocation6], %s1467
        %s1469 = sand.u32 %s91, 1
        %s1470 = smul.addr %s1469, 32
        %s1471 = scalar_lea.vmem [#allocation9], %s1470
        // Predicated region
        $region41: #{tpu_custom_call.1} parent=27 // pred_check
          %p1472 = pneg %p101
        $region42: #{tpu_custom_call.1} parent=27 // pred_check_branch
          %1474 = sbr.rel (%p1472) target = $region44
        $region43: #{tpu_custom_call.1} parent=27 // pred_region
          %s1475 = smul.u32 4, %s25
          %s1477 = ssub.s32 512, 512
          %1478 = vsyncadd %s1468, %s1477
          %s1479 = sadd.s32 %s24, %s1475
          %s1480 = smul.addr %s1479, 128
          %s1481 = scalar_lea.hbm %s2, %s1480
          %s1482 = sshll.u32 %s1471, 4
          %s1483 = int_to_ptr.vmem [resolvable:$true] %s1482
          %1488 = dma.vmem_to_hbm [thread:$0]  %s1483, 512, %s1481, %s1468, 128, 128, 8
        $region44: #{tpu_custom_call.1} parent=27 // pred_fallthru
          _
      $region28: #{tpu_custom_call.1} parent=5 // pred_fallthru
        _
      %p1489 = scmp.le.s32.totalorder 2, %s15
      // Predicated region
      $region45: #{tpu_custom_call.1} parent=5 // pred_check
        %p1490 = pneg %p1489
      $region46: #{tpu_custom_call.1} parent=5 // pred_check_branch
        %1492 = sbr.rel (%p1490) target = $region48
      $region47: #{tpu_custom_call.1} parent=5 // pred_region
        %s1493 = ssub.s32 %s15, 2
        // Predicated region
        $region49: #{tpu_custom_call.1} parent=47 // pred_check
          %p1494 = pneg %p107
        $region50: #{tpu_custom_call.1} parent=47 // pred_check_branch
          %1496 = sbr.rel (%p1494) target = $region52
        $region51: #{tpu_custom_call.1} parent=47 // pred_region
          %s1497 = sand.u32 %s92, 1
          %s1498 = scalar_lea.sflag [#allocation6], %s1497
          %s1499 = sand.u32 %s92, 1
          %s1500 = smul.addr %s1499, 32
          %s1501 = scalar_lea.vmem [#allocation9], %s1500
          %1502 = dma.done %s1498, 512
        $region52: #{tpu_custom_call.1} parent=47 // pred_fallthru
          _
      $region48: #{tpu_custom_call.1} parent=5 // pred_fallthru
        _
    $region6: #{tpu_custom_call.1} parent=1 // loop_footer
      %s19 = sadd.s32 1, %s15
    $region7: #{tpu_custom_call.1} parent=1 // loop_footer_branch
      %14 = sbr.rel target = $region3
    $region8: #{tpu_custom_call.1} parent=1 // loop_exit
      _
    %1503 = vsyncpa [#allocation5], 1
    %s1504 = scalar_lea.sflag [#allocation5], 1
    %1505 = vsyncpa %s1504, 1
    %1506 = vsyncpa [#allocation8], 1
    %1507 = vsyncpa [#allocation6], 1
    %s1508 = scalar_lea.sflag [#allocation6], 1
    %1509 = vsyncpa %s1508, 1

</llo_original>
